<compile_context>
chip_gen: v7x
topology: tpu7x:2x2x1
jax: 0.10.0
libtpu: 0.0.40
codegen_flags: <defaults>
</compile_context>

<pallas_src>
import math
import functools

import jax
import jax.numpy as jnp
from jax.experimental import pallas as pl
from jax.experimental.pallas import tpu as pltpu

_INV_SQRT2 = 1.0 / math.sqrt(2.0)


def bert_layer_kernel(x_q_ref, x_full_ref, mask_ref,
                      wq_ref, bq_ref, wk_ref, bk_ref, wv_ref, bv_ref,
                      wao_ref, bao_ref, g1_ref, be1_ref,
                      wi_ref, bi_ref, wo_ref, bo_ref, g2_ref, be2_ref,
                      o_ref, k_scratch, v_scratch,
                      *, num_heads, head_dim, eps):
    qi = pl.program_id(1)

    # --- K/V projections for the whole sequence: once per batch element. ---
    # Results persist in bf16 VMEM scratch across all query tiles of this batch
    # element (grid axis 1 is "arbitrary", so it is never split across cores).
    @pl.when(qi == 0)
    def _():
        xf = x_full_ref[0].astype(jnp.bfloat16)                       # (S, H)
        k = jnp.dot(xf, wk_ref[...], preferred_element_type=jnp.float32) + bk_ref[...]
        v = jnp.dot(xf, wv_ref[...], preferred_element_type=jnp.float32) + bv_ref[...]
        k_scratch[...] = k.astype(jnp.bfloat16)
        v_scratch[...] = v.astype(jnp.bfloat16)

    x_q = x_q_ref[0]                                                  # (TQ, H) f32
    x_qb = x_q.astype(jnp.bfloat16)

    # --- Q projection for this query tile (bf16 MXU, f32 accumulation). ---
    q = jnp.dot(x_qb, wq_ref[...], preferred_element_type=jnp.float32) + bq_ref[...]
    qb = q.astype(jnp.bfloat16)                                       # (TQ, H)
    kb = k_scratch[...]                                               # (S, H) bf16
    vb = v_scratch[...]                                               # (S, H) bf16

    tq = x_q.shape[0]
    s_len = kb.shape[0]
    scale = 1.0 / math.sqrt(head_dim)
    # Hoist the additive-mask broadcast out of the head loop.
    mask2d = jnp.broadcast_to(mask_ref[0], (tq, s_len))               # (TQ, S) f32

    wao = wao_ref[...]                                                # (H, H) bf16
    hidden = wao.shape[1]
    attn_acc = jnp.zeros((tq, hidden), jnp.float32)

    # TODO(synk): at real head_dim=64 the score/context matmuls leave the MXU
    # partially occupied; batched (3-D) dot_general over heads or head pairing
    # would improve occupancy further.
    for h in range(num_heads):
        lo = h * head_dim
        hi = lo + head_dim
        qh = qb[:, lo:hi]                                             # (TQ, hd) bf16
        kh = kb[:, lo:hi]                                             # (S,  hd) bf16
        vh = vb[:, lo:hi]                                             # (S,  hd) bf16
        # q @ k^T without materializing a transposed copy of k.
        scores = jax.lax.dot_general(
            qh, kh, (((1,), (1,)), ((), ())),
            preferred_element_type=jnp.float32)                       # (TQ, S) f32
        scores = scores * scale + mask2d
        m = jnp.max(scores, axis=-1, keepdims=True)
        e = jnp.exp(scores - m)
        denom = jnp.sum(e, axis=-1, keepdims=True)
        probs = e * pl.reciprocal(denom, approx=True)                 # EUP, no divide
        ctx_h = jnp.dot(probs.astype(jnp.bfloat16), vh,
                        preferred_element_type=jnp.float32)           # (TQ, hd) f32
        # Fold the head concat into the self-output projection: accumulate
        # ctx_h @ Wao[lo:hi, :] instead of concatenating heads.
        attn_acc = attn_acc + jnp.dot(ctx_h.astype(jnp.bfloat16), wao[lo:hi, :],
                                      preferred_element_type=jnp.float32)

    def layernorm(t, gamma, beta):
        u = jnp.mean(t, axis=-1, keepdims=True)
        c = t - u
        var = jnp.mean(c * c, axis=-1, keepdims=True)
        return gamma * (c * jax.lax.rsqrt(var + eps)) + beta

    # --- BERTSelfOutput: dense (folded above) + bias + residual + LayerNorm ---
    attn_out = layernorm(attn_acc + bao_ref[...] + x_q, g1_ref[...], be1_ref[...])

    # --- BERTIntermediate: dense + erf-GELU (f32) ---
    inter = jnp.dot(attn_out.astype(jnp.bfloat16), wi_ref[...],
                    preferred_element_type=jnp.float32) + bi_ref[...]
    inter = inter * 0.5 * (1.0 + jax.lax.erf(inter * _INV_SQRT2))

    # --- BERTOutput: dense + bias + residual + LayerNorm ---
    out = jnp.dot(inter.astype(jnp.bfloat16), wo_ref[...],
                  preferred_element_type=jnp.float32) + bo_ref[...]
    out = layernorm(out + attn_out, g2_ref[...], be2_ref[...])

    o_ref[0] = out.astype(o_ref.dtype)


def bert_layer_forward(hidden_states, attention_mask, params, *, num_heads,
                       eps=1e-12, q_tile=None):
    """hidden_states: (B,S,H) f32; attention_mask: (B,1,S) additive f32 mask.
    Weight matrices in `params` are bf16; biases / LayerNorm params are f32."""
    B, S, H = hidden_states.shape
    I = params["wi"].shape[1]
    head_dim = H // num_heads

    if q_tile is None:
        # Query-tile the sequence when it is large enough to pipeline; fall back
        # to the full sequence for small / non-128-aligned S.
        if S % 256 == 0:
            q_tile = 256
        elif S % 128 == 0:
            q_tile = 128
        else:
            q_tile = S
    nq = S // q_tile

    # VMEM budget: resident bf16 weights + per-tile activations + K/V scratch.
    nbytes = lambda a: a.size * a.dtype.itemsize
    weight_bytes = sum(nbytes(v) for v in params.values())
    act_bytes = (4 * q_tile * H * 4      # x tile, q, attn_out, out (f32)
                 + S * H * 4             # full-sequence x (f32)
                 + 2 * S * H * 2         # K/V bf16 scratch
                 + 2 * q_tile * I * 4    # intermediate activations (f32)
                 + 2 * q_tile * S * 4)   # scores / probs (f32)
    vmem_limit = int(min(96 * 2**20, max(32 * 2**20, 2 * (weight_bytes + act_bytes))))
    # TODO(synk): on v7x (64 MiB VMEM/TC) with BERT-base sizes, tile wi/wo over
    # the intermediate dimension instead of keeping them fully resident.

    full = lambda shape: pl.BlockSpec(shape, lambda b, q: (0, 0))

    kernel = functools.partial(bert_layer_kernel, num_heads=num_heads,
                               head_dim=head_dim, eps=eps)

    layer_output = pl.pallas_call(
        kernel,
        out_shape=jax.ShapeDtypeStruct((B, S, H), jnp.float32),
        grid_spec=pltpu.PrefetchScalarGridSpec(
            num_scalar_prefetch=0,
            grid=(B, nq),
            in_specs=[
                pl.BlockSpec((1, q_tile, H), lambda b, q: (b, q, 0)),  # x query tile
                pl.BlockSpec((1, S, H), lambda b, q: (b, 0, 0)),       # x full (K/V src)
                pl.BlockSpec((1, 1, S), lambda b, q: (b, 0, 0)),       # additive mask
                full((H, H)), full((1, H)),      # Wq, bq
                full((H, H)), full((1, H)),      # Wk, bk
                full((H, H)), full((1, H)),      # Wv, bv
                full((H, H)), full((1, H)),      # W attn-out dense, b
                full((1, H)), full((1, H)),      # LN1 gamma, beta
                full((H, I)), full((1, I)),      # W intermediate, b
                full((I, H)), full((1, H)),      # W output, b
                full((1, H)), full((1, H)),      # LN2 gamma, beta
            ],
            out_specs=pl.BlockSpec((1, q_tile, H), lambda b, q: (b, q, 0)),
            scratch_shapes=[pltpu.VMEM((S, H), jnp.bfloat16),   # K cache (per batch el.)
                            pltpu.VMEM((S, H), jnp.bfloat16)],  # V cache
        ),
        compiler_params=pltpu.CompilerParams(
            dimension_semantics=("parallel", "arbitrary"),
            vmem_limit_bytes=vmem_limit),
    )(hidden_states, hidden_states, attention_mask,
      params["wq"], params["bq"], params["wk"], params["bk"],
      params["wv"], params["bv"], params["wao"], params["bao"],
      params["g1"], params["be1"], params["wi"], params["bi"],
      params["wo"], params["bo"], params["g2"], params["be2"])

    cos_sim = 0.0  # module hard-codes cos_sim = 0 and returns 0.5 * cos_sim
    return layer_output, 0.5 * cos_sim


def reference_mixed(x, mask, p, *, num_heads, eps=1e-12):
    """Pure-JAX mirror of the kernel's mixed-precision math (bf16 MXU operands,
    f32 accumulation / softmax / LayerNorm / GELU). Tight-tolerance check."""
    B, S, H = x.shape
    hd = H // num_heads
    bf = jnp.bfloat16

    def ln(t, g, be):
        u = t.mean(-1, keepdims=True)
        c = t - u
        var = (c * c).mean(-1, keepdims=True)
        return g * (c * jax.lax.rsqrt(var + eps)) + be

    def one(x2, m2):                                   # x2: (S,H) f32, m2: (1,S)
        xb = x2.astype(bf)
        q = jnp.dot(xb, p["wq"], preferred_element_type=jnp.float32) + p["bq"]
        k = (jnp.dot(xb, p["wk"], preferred_element_type=jnp.float32) + p["bk"]).astype(bf)
        v = (jnp.dot(xb, p["wv"], preferred_element_type=jnp.float32) + p["bv"]).astype(bf)
        qb = q.astype(bf)
        mask2 = jnp.broadcast_to(m2, (S, S))
        acc = jnp.zeros((S, H), jnp.float32)
        for h in range(num_heads):
            lo, hi = h * hd, (h + 1) * hd
            sc = jax.lax.dot_general(qb[:, lo:hi], k[:, lo:hi],
                                     (((1,), (1,)), ((), ())),
                                     preferred_element_type=jnp.float32)
            sc = sc * (1.0 / math.sqrt(hd)) + mask2
            sc = sc - sc.max(-1, keepdims=True)
            e = jnp.exp(sc)
            probs = e / e.sum(-1, keepdims=True)
            ctx = jnp.dot(probs.astype(bf), v[:, lo:hi],
                          preferred_element_type=jnp.float32)
            acc = acc + jnp.dot(ctx.astype(bf), p["wao"][lo:hi, :],
                                preferred_element_type=jnp.float32)
        attn = ln(acc + p["bao"] + x2, p["g1"], p["be1"])
        inter = jnp.dot(attn.astype(bf), p["wi"],
                        preferred_element_type=jnp.float32) + p["bi"]
        inter = inter * 0.5 * (1.0 + jax.lax.erf(inter * _INV_SQRT2))
        out = jnp.dot(inter.astype(bf), p["wo"],
                      preferred_element_type=jnp.float32) + p["bo"]
        return ln(out + attn, p["g2"], p["be2"])

    return jnp.stack([one(x[b], mask[b]) for b in range(B)], axis=0)


def reference_f32(x, mask, p, *, num_heads, eps=1e-12):
    """Pure-f32 reference mirroring the PyTorch module (dropout = identity)."""
    pf = {k: v.astype(jnp.float32) for k, v in p.items()}
    B, S, H = x.shape
    hd = H // num_heads
    q = x @ pf["wq"] + pf["bq"][0]
    k = x @ pf["wk"] + pf["bk"][0]
    v = x @ pf["wv"] + pf["bv"][0]
    to_heads = lambda t: t.reshape(B, S, num_heads, hd).transpose(0, 2, 1, 3)
    qh, kh, vh = to_heads(q), to_heads(k), to_heads(v)
    scores = jnp.einsum("bhqd,bhkd->bhqk", qh, kh) / math.sqrt(hd)
    scores = scores + mask[:, None, :, :]                   # (B,1,S) -> (B,1,1,S)
    probs = jax.nn.softmax(scores, axis=-1)
    ctx = jnp.einsum("bhqk,bhkd->bhqd", probs, vh).transpose(0, 2, 1, 3).reshape(B, S, H)

    def ln(t, g, b):
        u = t.mean(-1, keepdims=True)
        s = ((t - u) ** 2).mean(-1, keepdims=True)
        return g[0] * ((t - u) / jnp.sqrt(s + eps)) + b[0]

    attn = ln(ctx @ pf["wao"] + pf["bao"][0] + x, pf["g1"], pf["be1"])
    inter = attn @ pf["wi"] + pf["bi"][0]
    inter = inter * 0.5 * (1.0 + jax.lax.erf(inter / math.sqrt(2.0)))
    return ln(inter @ pf["wo"] + pf["bo"][0] + attn, pf["g2"], pf["be2"])


if __name__ == "__main__":
    B, S, H, NH = 2, 8, 32, 4
    I = 4 * H  # intermediate_size

    key = jax.random.PRNGKey(0)
    ks = jax.random.split(key, 16)

    def w(k, shape):   # bf16 weights -> half the DMA / VMEM footprint
        return (0.02 * jax.random.normal(k, shape)).astype(jnp.bfloat16)

    def b(k, shape):   # biases / LN params stay f32
        return (0.02 * jax.random.normal(k, shape)).astype(jnp.float32)

    params = {
        "wq": w(ks[0], (H, H)),  "bq": b(ks[6], (1, H)),
        "wk": w(ks[1], (H, H)),  "bk": b(ks[7], (1, H)),
        "wv": w(ks[2], (H, H)),  "bv": b(ks[8], (1, H)),
        "wao": w(ks[3], (H, H)), "bao": b(ks[9], (1, H)),
        "g1": jnp.ones((1, H), jnp.float32), "be1": jnp.zeros((1, H), jnp.float32),
        "wi": w(ks[4], (H, I)),  "bi": b(ks[10], (1, I)),
        "wo": w(ks[5], (I, H)),  "bo": b(ks[11], (1, H)),
        "g2": jnp.ones((1, H), jnp.float32), "be2": jnp.zeros((1, H), jnp.float32),
    }
    # TODO(synk): dgedt_1 / dgedt_2 (768x768 linears), sigmoid and cos are built in
    # __init__ but never used in forward, so they are intentionally not materialized.

    hidden_states = jax.random.normal(ks[12], (B, S, H), dtype=jnp.float32)
    # Additive mask: last 2 key positions of batch 1 masked out (-10000), like BERT.
    attention_mask = jnp.zeros((B, 1, S), dtype=jnp.float32)
    attention_mask = attention_mask.at[1, 0, -2:].set(-10000.0)

    layer_output, half_cos = bert_layer_forward(
        hidden_states, attention_mask, params, num_heads=NH)
    layer_output = jax.block_until_ready(layer_output)

    ref_mixed = reference_mixed(hidden_states, attention_mask, params, num_heads=NH)
    ref_f32 = reference_f32(hidden_states, attention_mask, params, num_heads=NH)

    assert jnp.allclose(layer_output, ref_mixed, atol=5e-3, rtol=5e-3), \
        "mismatch vs mixed-precision reference"
    assert jnp.allclose(layer_output, ref_f32, atol=3e-2, rtol=3e-2), \
        "mismatch vs f32 reference"
    assert half_cos == 0.0

    print("KERNEL_OK")
</pallas_src>

<mosaic_0001>
module attributes {stable_mosaic.version = 11 : i64} {
  func.func @bert_layer_kernel(%arg0: i32, %arg1: i32, %arg2: memref<1x8x32xf32, #tpu.memory_space<vmem>>, %arg3: memref<1x8x32xf32, #tpu.memory_space<vmem>>, %arg4: memref<1x1x8xf32, #tpu.memory_space<vmem>>, %arg5: memref<32x32xbf16, #tpu.memory_space<vmem>>, %arg6: memref<1x32xf32, #tpu.memory_space<vmem>>, %arg7: memref<32x32xbf16, #tpu.memory_space<vmem>>, %arg8: memref<1x32xf32, #tpu.memory_space<vmem>>, %arg9: memref<32x32xbf16, #tpu.memory_space<vmem>>, %arg10: memref<1x32xf32, #tpu.memory_space<vmem>>, %arg11: memref<32x32xbf16, #tpu.memory_space<vmem>>, %arg12: memref<1x32xf32, #tpu.memory_space<vmem>>, %arg13: memref<1x32xf32, #tpu.memory_space<vmem>>, %arg14: memref<1x32xf32, #tpu.memory_space<vmem>>, %arg15: memref<32x128xbf16, #tpu.memory_space<vmem>>, %arg16: memref<1x128xf32, #tpu.memory_space<vmem>>, %arg17: memref<128x32xbf16, #tpu.memory_space<vmem>>, %arg18: memref<1x32xf32, #tpu.memory_space<vmem>>, %arg19: memref<1x32xf32, #tpu.memory_space<vmem>>, %arg20: memref<1x32xf32, #tpu.memory_space<vmem>>, %arg21: memref<1x8x32xf32, #tpu.memory_space<vmem>>, %arg22: memref<8x32xbf16, #tpu.memory_space<vmem>>, %arg23: memref<8x32xbf16, #tpu.memory_space<vmem>>) attributes {dimension_semantics = [#tpu.dimension_semantics<parallel>, #tpu.dimension_semantics<arbitrary>], iteration_bounds = array<i64: 2, 1>, scalar_prefetch = 0 : i64, scratch_operands = 2 : i64, tpu.core_type = #tpu.core_type<tc>, window_params = [{transform_indices = @transform_0, window_bounds = array<i64: 1, 8, 32>}, {transform_indices = @transform_1, window_bounds = array<i64: 1, 8, 32>}, {transform_indices = @transform_2, window_bounds = array<i64: 1, 1, 8>}, {pipeline_mode = #tpu.pipeline_mode<synchronous>, transform_indices = @transform_3, window_bounds = array<i64: 32, 32>}, {pipeline_mode = #tpu.pipeline_mode<synchronous>, transform_indices = @transform_4, window_bounds = array<i64: 1, 32>}, {pipeline_mode = #tpu.pipeline_mode<synchronous>, transform_indices = @transform_5, window_bounds = array<i64: 32, 32>}, {pipeline_mode = #tpu.pipeline_mode<synchronous>, transform_indices = @transform_6, window_bounds = array<i64: 1, 32>}, {pipeline_mode = #tpu.pipeline_mode<synchronous>, transform_indices = @transform_7, window_bounds = array<i64: 32, 32>}, {pipeline_mode = #tpu.pipeline_mode<synchronous>, transform_indices = @transform_8, window_bounds = array<i64: 1, 32>}, {pipeline_mode = #tpu.pipeline_mode<synchronous>, transform_indices = @transform_9, window_bounds = array<i64: 32, 32>}, {pipeline_mode = #tpu.pipeline_mode<synchronous>, transform_indices = @transform_10, window_bounds = array<i64: 1, 32>}, {pipeline_mode = #tpu.pipeline_mode<synchronous>, transform_indices = @transform_11, window_bounds = array<i64: 1, 32>}, {pipeline_mode = #tpu.pipeline_mode<synchronous>, transform_indices = @transform_12, window_bounds = array<i64: 1, 32>}, {pipeline_mode = #tpu.pipeline_mode<synchronous>, transform_indices = @transform_13, window_bounds = array<i64: 32, 128>}, {pipeline_mode = #tpu.pipeline_mode<synchronous>, transform_indices = @transform_14, window_bounds = array<i64: 1, 128>}, {pipeline_mode = #tpu.pipeline_mode<synchronous>, transform_indices = @transform_15, window_bounds = array<i64: 128, 32>}, {pipeline_mode = #tpu.pipeline_mode<synchronous>, transform_indices = @transform_16, window_bounds = array<i64: 1, 32>}, {pipeline_mode = #tpu.pipeline_mode<synchronous>, transform_indices = @transform_17, window_bounds = array<i64: 1, 32>}, {pipeline_mode = #tpu.pipeline_mode<synchronous>, transform_indices = @transform_18, window_bounds = array<i64: 1, 32>}, {transform_indices = @transform_19, window_bounds = array<i64: 1, 8, 32>}]} {
    %c0_i32 = arith.constant 0 : i32
    %0 = arith.cmpi eq, %arg1, %c0_i32 : i32
    %1 = arith.extui %0 : i1 to i32
    %c0_i32_0 = arith.constant 0 : i32
    %2 = arith.cmpi ne, %1, %c0_i32_0 : i32
    scf.if %2 {
      %c0_77 = arith.constant 0 : index
      %c0_78 = arith.constant 0 : index
      %c0_79 = arith.constant 0 : index
      %184 = vector.load %arg3[%c0_77, %c0_78, %c0_79] : memref<1x8x32xf32, #tpu.memory_space<vmem>>, vector<1x8x32xf32>
      %185 = vector.shape_cast %184 : vector<1x8x32xf32> to vector<8x32xf32>
      %186 = arith.truncf %185 : vector<8x32xf32> to vector<8x32xbf16>
      %c0_80 = arith.constant 0 : index
      %c0_81 = arith.constant 0 : index
      %187 = vector.load %arg7[%c0_80, %c0_81] : memref<32x32xbf16, #tpu.memory_space<vmem>>, vector<32x32xbf16>
      %cst_82 = arith.constant dense<0.000000e+00> : vector<8x32xf32>
      %188 = tpu.matmul %186, %187, %cst_82 {dimension_numbers = #tpu.dot_dimension_numbers<[1], [0], [0], [1], [0, 0, 1, 1], [], []>} : vector<8x32xbf16>, vector<32x32xbf16>, vector<8x32xf32> -> vector<8x32xf32>
      %c0_83 = arith.constant 0 : index
      %c0_84 = arith.constant 0 : index
      %189 = vector.load %arg8[%c0_83, %c0_84] : memref<1x32xf32, #tpu.memory_space<vmem>>, vector<1x32xf32>
      %190 = vector.broadcast %189 : vector<1x32xf32> to vector<8x32xf32>
      %191 = arith.addf %188, %190 : vector<8x32xf32>
      %c0_85 = arith.constant 0 : index
      %c0_86 = arith.constant 0 : index
      %192 = vector.load %arg9[%c0_85, %c0_86] : memref<32x32xbf16, #tpu.memory_space<vmem>>, vector<32x32xbf16>
      %cst_87 = arith.constant dense<0.000000e+00> : vector<8x32xf32>
      %193 = tpu.matmul %186, %192, %cst_87 {dimension_numbers = #tpu.dot_dimension_numbers<[1], [0], [0], [1], [0, 0, 1, 1], [], []>} : vector<8x32xbf16>, vector<32x32xbf16>, vector<8x32xf32> -> vector<8x32xf32>
      %c0_88 = arith.constant 0 : index
      %c0_89 = arith.constant 0 : index
      %194 = vector.load %arg10[%c0_88, %c0_89] : memref<1x32xf32, #tpu.memory_space<vmem>>, vector<1x32xf32>
      %195 = vector.broadcast %194 : vector<1x32xf32> to vector<8x32xf32>
      %196 = arith.addf %193, %195 : vector<8x32xf32>
      %197 = arith.truncf %191 : vector<8x32xf32> to vector<8x32xbf16>
      %c0_90 = arith.constant 0 : index
      %c0_91 = arith.constant 0 : index
      %198 = vector.load %arg22[%c0_90, %c0_91] : memref<8x32xbf16, #tpu.memory_space<vmem>>, vector<8x32xbf16>
      tpu.vector_store %arg22[%c0_90, %c0_91], %197 {strides = array<i32>} : memref<8x32xbf16, #tpu.memory_space<vmem>>, vector<8x32xbf16>,
      %199 = arith.truncf %196 : vector<8x32xf32> to vector<8x32xbf16>
      %c0_92 = arith.constant 0 : index
      %c0_93 = arith.constant 0 : index
      %200 = vector.load %arg23[%c0_92, %c0_93] : memref<8x32xbf16, #tpu.memory_space<vmem>>, vector<8x32xbf16>
      tpu.vector_store %arg23[%c0_92, %c0_93], %199 {strides = array<i32>} : memref<8x32xbf16, #tpu.memory_space<vmem>>, vector<8x32xbf16>,
    } else {
    }
    %c0 = arith.constant 0 : index
    %c0_1 = arith.constant 0 : index
    %c0_2 = arith.constant 0 : index
    %3 = vector.load %arg2[%c0, %c0_1, %c0_2] : memref<1x8x32xf32, #tpu.memory_space<vmem>>, vector<1x8x32xf32>
    %4 = vector.shape_cast %3 : vector<1x8x32xf32> to vector<8x32xf32>
    %5 = arith.truncf %4 : vector<8x32xf32> to vector<8x32xbf16>
    %c0_3 = arith.constant 0 : index
    %c0_4 = arith.constant 0 : index
    %6 = vector.load %arg5[%c0_3, %c0_4] : memref<32x32xbf16, #tpu.memory_space<vmem>>, vector<32x32xbf16>
    %cst = arith.constant dense<0.000000e+00> : vector<8x32xf32>
    %7 = tpu.matmul %5, %6, %cst {dimension_numbers = #tpu.dot_dimension_numbers<[1], [0], [0], [1], [0, 0, 1, 1], [], []>} : vector<8x32xbf16>, vector<32x32xbf16>, vector<8x32xf32> -> vector<8x32xf32>
    %c0_5 = arith.constant 0 : index
    %c0_6 = arith.constant 0 : index
    %8 = vector.load %arg6[%c0_5, %c0_6] : memref<1x32xf32, #tpu.memory_space<vmem>>, vector<1x32xf32>
    %9 = vector.broadcast %8 : vector<1x32xf32> to vector<8x32xf32>
    %10 = arith.addf %7, %9 : vector<8x32xf32>
    %11 = arith.truncf %10 : vector<8x32xf32> to vector<8x32xbf16>
    %c0_7 = arith.constant 0 : index
    %c0_8 = arith.constant 0 : index
    %12 = vector.load %arg22[%c0_7, %c0_8] : memref<8x32xbf16, #tpu.memory_space<vmem>>, vector<8x32xbf16>
    %c0_9 = arith.constant 0 : index
    %c0_10 = arith.constant 0 : index
    %13 = vector.load %arg23[%c0_9, %c0_10] : memref<8x32xbf16, #tpu.memory_space<vmem>>, vector<8x32xbf16>
    %c0_11 = arith.constant 0 : index
    %c0_12 = arith.constant 0 : index
    %c0_13 = arith.constant 0 : index
    %14 = vector.load %arg4[%c0_11, %c0_12, %c0_13] : memref<1x1x8xf32, #tpu.memory_space<vmem>>, vector<1x1x8xf32>
    %15 = vector.shape_cast %14 : vector<1x1x8xf32> to vector<1x8xf32>
    %16 = vector.shape_cast %15 : vector<1x8xf32> to vector<1x8xf32>
    %17 = vector.broadcast %16 : vector<1x8xf32> to vector<8x8xf32>
    %c0_14 = arith.constant 0 : index
    %c0_15 = arith.constant 0 : index
    %18 = vector.load %arg11[%c0_14, %c0_15] : memref<32x32xbf16, #tpu.memory_space<vmem>>, vector<32x32xbf16>
    %cst_16 = arith.constant 0.000000e+00 : f32
    %19 = vector.broadcast %cst_16 : f32 to vector<8x32xf32>
    %20 = vector.extract_strided_slice %11 {offsets = [0, 0], sizes = [8, 8], strides = [1, 1]} : vector<8x32xbf16> to vector<8x8xbf16>
    %21 = vector.extract_strided_slice %12 {offsets = [0, 0], sizes = [8, 8], strides = [1, 1]} : vector<8x32xbf16> to vector<8x8xbf16>
    %22 = vector.extract_strided_slice %13 {offsets = [0, 0], sizes = [8, 8], strides = [1, 1]} : vector<8x32xbf16> to vector<8x8xbf16>
    %cst_17 = arith.constant dense<0.000000e+00> : vector<8x8xf32>
    %23 = tpu.matmul %20, %21, %cst_17 {dimension_numbers = #tpu.dot_dimension_numbers<[1], [1], [0], [0], [0, 0, 1, 0], [], []>} : vector<8x8xbf16>, vector<8x8xbf16>, vector<8x8xf32> -> vector<8x8xf32>
    %cst_18 = arith.constant 0.353553385 : f32
    %24 = vector.broadcast %cst_18 : f32 to vector<8x8xf32>
    %25 = arith.mulf %23, %24 : vector<8x8xf32>
    %26 = arith.addf %25, %17 : vector<8x8xf32>
    %cst_19 = arith.constant dense<0xFF800000> : vector<8xf32>
    %27 = vector.multi_reduction <maximumf>, %26, %cst_19 [1] : vector<8x8xf32> to vector<8xf32>
    %28 = vector.shape_cast %27 : vector<8xf32> to vector<8x1xf32>
    %29 = vector.broadcast %28 : vector<8x1xf32> to vector<8x8xf32>
    %30 = arith.subf %26, %29 : vector<8x8xf32>
    %31 = math.exp %30 : vector<8x8xf32>
    %cst_20 = arith.constant dense<0.000000e+00> : vector<8xf32>
    %32 = vector.multi_reduction <add>, %31, %cst_20 [1] : vector<8x8xf32> to vector<8xf32>
    %33 = vector.shape_cast %32 : vector<8xf32> to vector<8x1xf32>
    %34 = tpu.reciprocal %33 {approx = true} : vector<8x1xf32> -> vector<8x1xf32>
    %35 = vector.broadcast %34 : vector<8x1xf32> to vector<8x8xf32>
    %36 = arith.mulf %31, %35 : vector<8x8xf32>
    %37 = arith.truncf %36 : vector<8x8xf32> to vector<8x8xbf16>
    %cst_21 = arith.constant dense<0.000000e+00> : vector<8x8xf32>
    %38 = tpu.matmul %37, %22, %cst_21 {dimension_numbers = #tpu.dot_dimension_numbers<[1], [0], [0], [1], [0, 0, 1, 1], [], []>} : vector<8x8xbf16>, vector<8x8xbf16>, vector<8x8xf32> -> vector<8x8xf32>
    %39 = arith.truncf %38 : vector<8x8xf32> to vector<8x8xbf16>
    %40 = vector.extract_strided_slice %18 {offsets = [0, 0], sizes = [8, 32], strides = [1, 1]} : vector<32x32xbf16> to vector<8x32xbf16>
    %cst_22 = arith.constant dense<0.000000e+00> : vector<8x32xf32>
    %41 = tpu.matmul %39, %40, %cst_22 {dimension_numbers = #tpu.dot_dimension_numbers<[1], [0], [0], [1], [0, 0, 1, 1], [], []>} : vector<8x8xbf16>, vector<8x32xbf16>, vector<8x32xf32> -> vector<8x32xf32>
    %42 = arith.addf %19, %41 : vector<8x32xf32>
    %43 = vector.extract_strided_slice %11 {offsets = [0, 8], sizes = [8, 8], strides = [1, 1]} : vector<8x32xbf16> to vector<8x8xbf16>
    %44 = vector.extract_strided_slice %12 {offsets = [0, 8], sizes = [8, 8], strides = [1, 1]} : vector<8x32xbf16> to vector<8x8xbf16>
    %45 = vector.extract_strided_slice %13 {offsets = [0, 8], sizes = [8, 8], strides = [1, 1]} : vector<8x32xbf16> to vector<8x8xbf16>
    %cst_23 = arith.constant dense<0.000000e+00> : vector<8x8xf32>
    %46 = tpu.matmul %43, %44, %cst_23 {dimension_numbers = #tpu.dot_dimension_numbers<[1], [1], [0], [0], [0, 0, 1, 0], [], []>} : vector<8x8xbf16>, vector<8x8xbf16>, vector<8x8xf32> -> vector<8x8xf32>
    %cst_24 = arith.constant 0.353553385 : f32
    %47 = vector.broadcast %cst_24 : f32 to vector<8x8xf32>
    %48 = arith.mulf %46, %47 : vector<8x8xf32>
    %49 = arith.addf %48, %17 : vector<8x8xf32>
    %cst_25 = arith.constant dense<0xFF800000> : vector<8xf32>
    %50 = vector.multi_reduction <maximumf>, %49, %cst_25 [1] : vector<8x8xf32> to vector<8xf32>
    %51 = vector.shape_cast %50 : vector<8xf32> to vector<8x1xf32>
    %52 = vector.broadcast %51 : vector<8x1xf32> to vector<8x8xf32>
    %53 = arith.subf %49, %52 : vector<8x8xf32>
    %54 = math.exp %53 : vector<8x8xf32>
    %cst_26 = arith.constant dense<0.000000e+00> : vector<8xf32>
    %55 = vector.multi_reduction <add>, %54, %cst_26 [1] : vector<8x8xf32> to vector<8xf32>
    %56 = vector.shape_cast %55 : vector<8xf32> to vector<8x1xf32>
    %57 = tpu.reciprocal %56 {approx = true} : vector<8x1xf32> -> vector<8x1xf32>
    %58 = vector.broadcast %57 : vector<8x1xf32> to vector<8x8xf32>
    %59 = arith.mulf %54, %58 : vector<8x8xf32>
    %60 = arith.truncf %59 : vector<8x8xf32> to vector<8x8xbf16>
    %cst_27 = arith.constant dense<0.000000e+00> : vector<8x8xf32>
    %61 = tpu.matmul %60, %45, %cst_27 {dimension_numbers = #tpu.dot_dimension_numbers<[1], [0], [0], [1], [0, 0, 1, 1], [], []>} : vector<8x8xbf16>, vector<8x8xbf16>, vector<8x8xf32> -> vector<8x8xf32>
    %62 = arith.truncf %61 : vector<8x8xf32> to vector<8x8xbf16>
    %63 = vector.extract_strided_slice %18 {offsets = [8, 0], sizes = [8, 32], strides = [1, 1]} : vector<32x32xbf16> to vector<8x32xbf16>
    %cst_28 = arith.constant dense<0.000000e+00> : vector<8x32xf32>
    %64 = tpu.matmul %62, %63, %cst_28 {dimension_numbers = #tpu.dot_dimension_numbers<[1], [0], [0], [1], [0, 0, 1, 1], [], []>} : vector<8x8xbf16>, vector<8x32xbf16>, vector<8x32xf32> -> vector<8x32xf32>
    %65 = arith.addf %42, %64 : vector<8x32xf32>
    %66 = vector.extract_strided_slice %11 {offsets = [0, 16], sizes = [8, 8], strides = [1, 1]} : vector<8x32xbf16> to vector<8x8xbf16>
    %67 = vector.extract_strided_slice %12 {offsets = [0, 16], sizes = [8, 8], strides = [1, 1]} : vector<8x32xbf16> to vector<8x8xbf16>
    %68 = vector.extract_strided_slice %13 {offsets = [0, 16], sizes = [8, 8], strides = [1, 1]} : vector<8x32xbf16> to vector<8x8xbf16>
    %cst_29 = arith.constant dense<0.000000e+00> : vector<8x8xf32>
    %69 = tpu.matmul %66, %67, %cst_29 {dimension_numbers = #tpu.dot_dimension_numbers<[1], [1], [0], [0], [0, 0, 1, 0], [], []>} : vector<8x8xbf16>, vector<8x8xbf16>, vector<8x8xf32> -> vector<8x8xf32>
    %cst_30 = arith.constant 0.353553385 : f32
    %70 = vector.broadcast %cst_30 : f32 to vector<8x8xf32>
    %71 = arith.mulf %69, %70 : vector<8x8xf32>
    %72 = arith.addf %71, %17 : vector<8x8xf32>
    %cst_31 = arith.constant dense<0xFF800000> : vector<8xf32>
    %73 = vector.multi_reduction <maximumf>, %72, %cst_31 [1] : vector<8x8xf32> to vector<8xf32>
    %74 = vector.shape_cast %73 : vector<8xf32> to vector<8x1xf32>
    %75 = vector.broadcast %74 : vector<8x1xf32> to vector<8x8xf32>
    %76 = arith.subf %72, %75 : vector<8x8xf32>
    %77 = math.exp %76 : vector<8x8xf32>
    %cst_32 = arith.constant dense<0.000000e+00> : vector<8xf32>
    %78 = vector.multi_reduction <add>, %77, %cst_32 [1] : vector<8x8xf32> to vector<8xf32>
    %79 = vector.shape_cast %78 : vector<8xf32> to vector<8x1xf32>
    %80 = tpu.reciprocal %79 {approx = true} : vector<8x1xf32> -> vector<8x1xf32>
    %81 = vector.broadcast %80 : vector<8x1xf32> to vector<8x8xf32>
    %82 = arith.mulf %77, %81 : vector<8x8xf32>
    %83 = arith.truncf %82 : vector<8x8xf32> to vector<8x8xbf16>
    %cst_33 = arith.constant dense<0.000000e+00> : vector<8x8xf32>
    %84 = tpu.matmul %83, %68, %cst_33 {dimension_numbers = #tpu.dot_dimension_numbers<[1], [0], [0], [1], [0, 0, 1, 1], [], []>} : vector<8x8xbf16>, vector<8x8xbf16>, vector<8x8xf32> -> vector<8x8xf32>
    %85 = arith.truncf %84 : vector<8x8xf32> to vector<8x8xbf16>
    %86 = vector.extract_strided_slice %18 {offsets = [16, 0], sizes = [8, 32], strides = [1, 1]} : vector<32x32xbf16> to vector<8x32xbf16>
    %cst_34 = arith.constant dense<0.000000e+00> : vector<8x32xf32>
    %87 = tpu.matmul %85, %86, %cst_34 {dimension_numbers = #tpu.dot_dimension_numbers<[1], [0], [0], [1], [0, 0, 1, 1], [], []>} : vector<8x8xbf16>, vector<8x32xbf16>, vector<8x32xf32> -> vector<8x32xf32>
    %88 = arith.addf %65, %87 : vector<8x32xf32>
    %89 = vector.extract_strided_slice %11 {offsets = [0, 24], sizes = [8, 8], strides = [1, 1]} : vector<8x32xbf16> to vector<8x8xbf16>
    %90 = vector.extract_strided_slice %12 {offsets = [0, 24], sizes = [8, 8], strides = [1, 1]} : vector<8x32xbf16> to vector<8x8xbf16>
    %91 = vector.extract_strided_slice %13 {offsets = [0, 24], sizes = [8, 8], strides = [1, 1]} : vector<8x32xbf16> to vector<8x8xbf16>
    %cst_35 = arith.constant dense<0.000000e+00> : vector<8x8xf32>
    %92 = tpu.matmul %89, %90, %cst_35 {dimension_numbers = #tpu.dot_dimension_numbers<[1], [1], [0], [0], [0, 0, 1, 0], [], []>} : vector<8x8xbf16>, vector<8x8xbf16>, vector<8x8xf32> -> vector<8x8xf32>
    %cst_36 = arith.constant 0.353553385 : f32
    %93 = vector.broadcast %cst_36 : f32 to vector<8x8xf32>
    %94 = arith.mulf %92, %93 : vector<8x8xf32>
    %95 = arith.addf %94, %17 : vector<8x8xf32>
    %cst_37 = arith.constant dense<0xFF800000> : vector<8xf32>
    %96 = vector.multi_reduction <maximumf>, %95, %cst_37 [1] : vector<8x8xf32> to vector<8xf32>
    %97 = vector.shape_cast %96 : vector<8xf32> to vector<8x1xf32>
    %98 = vector.broadcast %97 : vector<8x1xf32> to vector<8x8xf32>
    %99 = arith.subf %95, %98 : vector<8x8xf32>
    %100 = math.exp %99 : vector<8x8xf32>
    %cst_38 = arith.constant dense<0.000000e+00> : vector<8xf32>
    %101 = vector.multi_reduction <add>, %100, %cst_38 [1] : vector<8x8xf32> to vector<8xf32>
    %102 = vector.shape_cast %101 : vector<8xf32> to vector<8x1xf32>
    %103 = tpu.reciprocal %102 {approx = true} : vector<8x1xf32> -> vector<8x1xf32>
    %104 = vector.broadcast %103 : vector<8x1xf32> to vector<8x8xf32>
    %105 = arith.mulf %100, %104 : vector<8x8xf32>
    %106 = arith.truncf %105 : vector<8x8xf32> to vector<8x8xbf16>
    %cst_39 = arith.constant dense<0.000000e+00> : vector<8x8xf32>
    %107 = tpu.matmul %106, %91, %cst_39 {dimension_numbers = #tpu.dot_dimension_numbers<[1], [0], [0], [1], [0, 0, 1, 1], [], []>} : vector<8x8xbf16>, vector<8x8xbf16>, vector<8x8xf32> -> vector<8x8xf32>
    %108 = arith.truncf %107 : vector<8x8xf32> to vector<8x8xbf16>
    %109 = vector.extract_strided_slice %18 {offsets = [24, 0], sizes = [8, 32], strides = [1, 1]} : vector<32x32xbf16> to vector<8x32xbf16>
    %cst_40 = arith.constant dense<0.000000e+00> : vector<8x32xf32>
    %110 = tpu.matmul %108, %109, %cst_40 {dimension_numbers = #tpu.dot_dimension_numbers<[1], [0], [0], [1], [0, 0, 1, 1], [], []>} : vector<8x8xbf16>, vector<8x32xbf16>, vector<8x32xf32> -> vector<8x32xf32>
    %111 = arith.addf %88, %110 : vector<8x32xf32>
    %c0_41 = arith.constant 0 : index
    %c0_42 = arith.constant 0 : index
    %112 = vector.load %arg12[%c0_41, %c0_42] : memref<1x32xf32, #tpu.memory_space<vmem>>, vector<1x32xf32>
    %113 = vector.broadcast %112 : vector<1x32xf32> to vector<8x32xf32>
    %114 = arith.addf %111, %113 : vector<8x32xf32>
    %115 = arith.addf %114, %4 : vector<8x32xf32>
    %c0_43 = arith.constant 0 : index
    %c0_44 = arith.constant 0 : index
    %116 = vector.load %arg13[%c0_43, %c0_44] : memref<1x32xf32, #tpu.memory_space<vmem>>, vector<1x32xf32>
    %c0_45 = arith.constant 0 : index
    %c0_46 = arith.constant 0 : index
    %117 = vector.load %arg14[%c0_45, %c0_46] : memref<1x32xf32, #tpu.memory_space<vmem>>, vector<1x32xf32>
    %cst_47 = arith.constant dense<0.000000e+00> : vector<8xf32>
    %118 = vector.multi_reduction <add>, %115, %cst_47 [1] : vector<8x32xf32> to vector<8xf32>
    %119 = vector.shape_cast %118 : vector<8xf32> to vector<8x1xf32>
    %cst_48 = arith.constant 3.200000e+01 : f32
    %120 = vector.broadcast %cst_48 : f32 to vector<8x1xf32>
    %121 = arith.divf %119, %120 : vector<8x1xf32>
    %122 = vector.broadcast %121 : vector<8x1xf32> to vector<8x32xf32>
    %123 = arith.subf %115, %122 : vector<8x32xf32>
    %124 = arith.mulf %123, %123 : vector<8x32xf32>
    %cst_49 = arith.constant dense<0.000000e+00> : vector<8xf32>
    %125 = vector.multi_reduction <add>, %124, %cst_49 [1] : vector<8x32xf32> to vector<8xf32>
    %126 = vector.shape_cast %125 : vector<8xf32> to vector<8x1xf32>
    %cst_50 = arith.constant 3.200000e+01 : f32
    %127 = vector.broadcast %cst_50 : f32 to vector<8x1xf32>
    %128 = arith.divf %126, %127 : vector<8x1xf32>
    %cst_51 = arith.constant 9.99999996E-13 : f32
    %129 = vector.broadcast %cst_51 : f32 to vector<8x1xf32>
    %130 = arith.addf %128, %129 : vector<8x1xf32>
    %131 = math.rsqrt %130 : vector<8x1xf32>
    %132 = vector.broadcast %131 : vector<8x1xf32> to vector<8x32xf32>
    %133 = arith.mulf %123, %132 : vector<8x32xf32>
    %134 = vector.broadcast %116 : vector<1x32xf32> to vector<8x32xf32>
    %135 = arith.mulf %134, %133 : vector<8x32xf32>
    %136 = vector.broadcast %117 : vector<1x32xf32> to vector<8x32xf32>
    %137 = arith.addf %135, %136 : vector<8x32xf32>
    %138 = arith.truncf %137 : vector<8x32xf32> to vector<8x32xbf16>
    %c0_52 = arith.constant 0 : index
    %c0_53 = arith.constant 0 : index
    %139 = vector.load %arg15[%c0_52, %c0_53] : memref<32x128xbf16, #tpu.memory_space<vmem>>, vector<32x128xbf16>
    %cst_54 = arith.constant dense<0.000000e+00> : vector<8x128xf32>
    %140 = tpu.matmul %138, %139, %cst_54 {dimension_numbers = #tpu.dot_dimension_numbers<[1], [0], [0], [1], [0, 0, 1, 1], [], []>} : vector<8x32xbf16>, vector<32x128xbf16>, vector<8x128xf32> -> vector<8x128xf32>
    %c0_55 = arith.constant 0 : index
    %c0_56 = arith.constant 0 : index
    %141 = vector.load %arg16[%c0_55, %c0_56] : memref<1x128xf32, #tpu.memory_space<vmem>>, vector<1x128xf32>
    %142 = vector.broadcast %141 : vector<1x128xf32> to vector<8x128xf32>
    %143 = arith.addf %140, %142 : vector<8x128xf32>
    %cst_57 = arith.constant 5.000000e-01 : f32
    %144 = vector.broadcast %cst_57 : f32 to vector<8x128xf32>
    %145 = arith.mulf %143, %144 : vector<8x128xf32>
    %cst_58 = arith.constant 0.707106769 : f32
    %146 = vector.broadcast %cst_58 : f32 to vector<8x128xf32>
    %147 = arith.mulf %143, %146 : vector<8x128xf32>
    %148 = math.erf %147 : vector<8x128xf32>
    %cst_59 = arith.constant 1.000000e+00 : f32
    %149 = vector.broadcast %cst_59 : f32 to vector<8x128xf32>
    %150 = arith.addf %149, %148 : vector<8x128xf32>
    %151 = arith.mulf %145, %150 : vector<8x128xf32>
    %152 = arith.truncf %151 : vector<8x128xf32> to vector<8x128xbf16>
    %c0_60 = arith.constant 0 : index
    %c0_61 = arith.constant 0 : index
    %153 = vector.load %arg17[%c0_60, %c0_61] : memref<128x32xbf16, #tpu.memory_space<vmem>>, vector<128x32xbf16>
    %cst_62 = arith.constant dense<0.000000e+00> : vector<8x32xf32>
    %154 = tpu.matmul %152, %153, %cst_62 {dimension_numbers = #tpu.dot_dimension_numbers<[1], [0], [0], [1], [0, 0, 1, 1], [], []>} : vector<8x128xbf16>, vector<128x32xbf16>, vector<8x32xf32> -> vector<8x32xf32>
    %c0_63 = arith.constant 0 : index
    %c0_64 = arith.constant 0 : index
    %155 = vector.load %arg18[%c0_63, %c0_64] : memref<1x32xf32, #tpu.memory_space<vmem>>, vector<1x32xf32>
    %156 = vector.broadcast %155 : vector<1x32xf32> to vector<8x32xf32>
    %157 = arith.addf %154, %156 : vector<8x32xf32>
    %158 = arith.addf %157, %137 : vector<8x32xf32>
    %c0_65 = arith.constant 0 : index
    %c0_66 = arith.constant 0 : index
    %159 = vector.load %arg19[%c0_65, %c0_66] : memref<1x32xf32, #tpu.memory_space<vmem>>, vector<1x32xf32>
    %c0_67 = arith.constant 0 : index
    %c0_68 = arith.constant 0 : index
    %160 = vector.load %arg20[%c0_67, %c0_68] : memref<1x32xf32, #tpu.memory_space<vmem>>, vector<1x32xf32>
    %cst_69 = arith.constant dense<0.000000e+00> : vector<8xf32>
    %161 = vector.multi_reduction <add>, %158, %cst_69 [1] : vector<8x32xf32> to vector<8xf32>
    %162 = vector.shape_cast %161 : vector<8xf32> to vector<8x1xf32>
    %cst_70 = arith.constant 3.200000e+01 : f32
    %163 = vector.broadcast %cst_70 : f32 to vector<8x1xf32>
    %164 = arith.divf %162, %163 : vector<8x1xf32>
    %165 = vector.broadcast %164 : vector<8x1xf32> to vector<8x32xf32>
    %166 = arith.subf %158, %165 : vector<8x32xf32>
    %167 = arith.mulf %166, %166 : vector<8x32xf32>
    %cst_71 = arith.constant dense<0.000000e+00> : vector<8xf32>
    %168 = vector.multi_reduction <add>, %167, %cst_71 [1] : vector<8x32xf32> to vector<8xf32>
    %169 = vector.shape_cast %168 : vector<8xf32> to vector<8x1xf32>
    %cst_72 = arith.constant 3.200000e+01 : f32
    %170 = vector.broadcast %cst_72 : f32 to vector<8x1xf32>
    %171 = arith.divf %169, %170 : vector<8x1xf32>
    %cst_73 = arith.constant 9.99999996E-13 : f32
    %172 = vector.broadcast %cst_73 : f32 to vector<8x1xf32>
    %173 = arith.addf %171, %172 : vector<8x1xf32>
    %174 = math.rsqrt %173 : vector<8x1xf32>
    %175 = vector.broadcast %174 : vector<8x1xf32> to vector<8x32xf32>
    %176 = arith.mulf %166, %175 : vector<8x32xf32>
    %177 = vector.broadcast %159 : vector<1x32xf32> to vector<8x32xf32>
    %178 = arith.mulf %177, %176 : vector<8x32xf32>
    %179 = vector.broadcast %160 : vector<1x32xf32> to vector<8x32xf32>
    %180 = arith.addf %178, %179 : vector<8x32xf32>
    %c0_74 = arith.constant 0 : index
    %c0_75 = arith.constant 0 : index
    %c0_76 = arith.constant 0 : index
    %181 = vector.load %arg21[%c0_74, %c0_75, %c0_76] : memref<1x8x32xf32, #tpu.memory_space<vmem>>, vector<1x8x32xf32>
    %182 = vector.shape_cast %181 : vector<1x8x32xf32> to vector<8x32xf32>
    %183 = vector.shape_cast %180 : vector<8x32xf32> to vector<1x8x32xf32>
    tpu.vector_store %arg21[%c0_74, %c0_75, %c0_76], %183 {strides = array<i32>} : memref<1x8x32xf32, #tpu.memory_space<vmem>>, vector<1x8x32xf32>,
    return
  }
  func.func @transform_0(%arg0: i32, %arg1: i32) -> (i32, i32, i32) {
    %c0_i32 = arith.constant 0 : i32
    %c0_i32_0 = arith.constant 0 : i32
    return %arg0, %arg1, %c0_i32 : i32, i32, i32
  }
  func.func @transform_1(%arg0: i32, %arg1: i32) -> (i32, i32, i32) {
    %c0_i32 = arith.constant 0 : i32
    %c0_i32_0 = arith.constant 0 : i32
    %c0_i32_1 = arith.constant 0 : i32
    return %arg0, %c0_i32, %c0_i32_0 : i32, i32, i32
  }
  func.func @transform_2(%arg0: i32, %arg1: i32) -> (i32, i32, i32) {
    %c0_i32 = arith.constant 0 : i32
    %c0_i32_0 = arith.constant 0 : i32
    %c0_i32_1 = arith.constant 0 : i32
    return %arg0, %c0_i32, %c0_i32_0 : i32, i32, i32
  }
  func.func @transform_3(%arg0: i32, %arg1: i32) -> (i32, i32) {
    %c0_i32 = arith.constant 0 : i32
    %c0_i32_0 = arith.constant 0 : i32
    %c0_i32_1 = arith.constant 0 : i32
    return %c0_i32, %c0_i32_0 : i32, i32
  }
  func.func @transform_4(%arg0: i32, %arg1: i32) -> (i32, i32) {
    %c0_i32 = arith.constant 0 : i32
    %c0_i32_0 = arith.constant 0 : i32
    %c0_i32_1 = arith.constant 0 : i32
    return %c0_i32, %c0_i32_0 : i32, i32
  }
  func.func @transform_5(%arg0: i32, %arg1: i32) -> (i32, i32) {
    %c0_i32 = arith.constant 0 : i32
    %c0_i32_0 = arith.constant 0 : i32
    %c0_i32_1 = arith.constant 0 : i32
    return %c0_i32, %c0_i32_0 : i32, i32
  }
  func.func @transform_6(%arg0: i32, %arg1: i32) -> (i32, i32) {
    %c0_i32 = arith.constant 0 : i32
    %c0_i32_0 = arith.constant 0 : i32
    %c0_i32_1 = arith.constant 0 : i32
    return %c0_i32, %c0_i32_0 : i32, i32
  }
  func.func @transform_7(%arg0: i32, %arg1: i32) -> (i32, i32) {
    %c0_i32 = arith.constant 0 : i32
    %c0_i32_0 = arith.constant 0 : i32
    %c0_i32_1 = arith.constant 0 : i32
    return %c0_i32, %c0_i32_0 : i32, i32
  }
  func.func @transform_8(%arg0: i32, %arg1: i32) -> (i32, i32) {
    %c0_i32 = arith.constant 0 : i32
    %c0_i32_0 = arith.constant 0 : i32
    %c0_i32_1 = arith.constant 0 : i32
    return %c0_i32, %c0_i32_0 : i32, i32
  }
  func.func @transform_9(%arg0: i32, %arg1: i32) -> (i32, i32) {
    %c0_i32 = arith.constant 0 : i32
    %c0_i32_0 = arith.constant 0 : i32
    %c0_i32_1 = arith.constant 0 : i32
    return %c0_i32, %c0_i32_0 : i32, i32
  }
  func.func @transform_10(%arg0: i32, %arg1: i32) -> (i32, i32) {
    %c0_i32 = arith.constant 0 : i32
    %c0_i32_0 = arith.constant 0 : i32
    %c0_i32_1 = arith.constant 0 : i32
    return %c0_i32, %c0_i32_0 : i32, i32
  }
  func.func @transform_11(%arg0: i32, %arg1: i32) -> (i32, i32) {
    %c0_i32 = arith.constant 0 : i32
    %c0_i32_0 = arith.constant 0 : i32
    %c0_i32_1 = arith.constant 0 : i32
    return %c0_i32, %c0_i32_0 : i32, i32
  }
  func.func @transform_12(%arg0: i32, %arg1: i32) -> (i32, i32) {
    %c0_i32 = arith.constant 0 : i32
    %c0_i32_0 = arith.constant 0 : i32
    %c0_i32_1 = arith.constant 0 : i32
    return %c0_i32, %c0_i32_0 : i32, i32
  }
  func.func @transform_13(%arg0: i32, %arg1: i32) -> (i32, i32) {
    %c0_i32 = arith.constant 0 : i32
    %c0_i32_0 = arith.constant 0 : i32
    %c0_i32_1 = arith.constant 0 : i32
    return %c0_i32, %c0_i32_0 : i32, i32
  }
  func.func @transform_14(%arg0: i32, %arg1: i32) -> (i32, i32) {
    %c0_i32 = arith.constant 0 : i32
    %c0_i32_0 = arith.constant 0 : i32
    %c0_i32_1 = arith.constant 0 : i32
    return %c0_i32, %c0_i32_0 : i32, i32
  }
  func.func @transform_15(%arg0: i32, %arg1: i32) -> (i32, i32) {
    %c0_i32 = arith.constant 0 : i32
    %c0_i32_0 = arith.constant 0 : i32
    %c0_i32_1 = arith.constant 0 : i32
    return %c0_i32, %c0_i32_0 : i32, i32
  }
  func.func @transform_16(%arg0: i32, %arg1: i32) -> (i32, i32) {
    %c0_i32 = arith.constant 0 : i32
    %c0_i32_0 = arith.constant 0 : i32
    %c0_i32_1 = arith.constant 0 : i32
    return %c0_i32, %c0_i32_0 : i32, i32
  }
  func.func @transform_17(%arg0: i32, %arg1: i32) -> (i32, i32) {
    %c0_i32 = arith.constant 0 : i32
    %c0_i32_0 = arith.constant 0 : i32
    %c0_i32_1 = arith.constant 0 : i32
    return %c0_i32, %c0_i32_0 : i32, i32
  }
  func.func @transform_18(%arg0: i32, %arg1: i32) -> (i32, i32) {
    %c0_i32 = arith.constant 0 : i32
    %c0_i32_0 = arith.constant 0 : i32
    %c0_i32_1 = arith.constant 0 : i32
    return %c0_i32, %c0_i32_0 : i32, i32
  }
  func.func @transform_19(%arg0: i32, %arg1: i32) -> (i32, i32, i32) {
    %c0_i32 = arith.constant 0 : i32
    %c0_i32_0 = arith.constant 0 : i32
    return %arg0, %arg1, %c0_i32 : i32, i32, i32
  }
}

</mosaic_0001>

<llo_original>
// kernel: tpu_custom_call.1
$region0: #{tpu_custom_call.1}
  #allocation0 [shape = 'u32[]', space=smem, size = 0x4, offset = 0x4, fixed_abs, tag = 'smem constant byte address 0x4 - core index']
  #allocation1 [shape = 'u32[144,128]{1,0:T(1,128)}', space=vmem, size = 0x12000, scoped, tag = 'internal scratch']
  #allocation2 [shape = 'bf16[8,32]{1,0:T(8,128)(2,1)}', space=vmem, size = 0x800, scoped, tag = 'scratch operand']
  #allocation3 [shape = 'bf16[8,32]{1,0:T(8,128)(2,1)}', space=vmem, size = 0x800, scoped, tag = 'scratch operand']
  %s0 = inlined_call_operand.vmem [shape: f32[2,8,32], index: 0, kind: input, shape index: {}]
  %s1 = inlined_call_operand.vmem [shape: f32[2,8,32], index: 1, kind: input, shape index: {}]
  %s2 = inlined_call_operand.hbm [shape: f32[2,1,8], index: 2, kind: input, shape index: {}]
  %s3 = inlined_call_operand.vmem [shape: bf16[32,32], index: 3, kind: input, shape index: {}]
  %s4 = inlined_call_operand.vmem [shape: f32[1,32], index: 4, kind: input, shape index: {}]
  %s5 = inlined_call_operand.vmem [shape: bf16[32,32], index: 5, kind: input, shape index: {}]
  %s6 = inlined_call_operand.hbm [shape: f32[1,32], index: 6, kind: input, shape index: {}]
  %s7 = inlined_call_operand.vmem [shape: bf16[32,32], index: 7, kind: input, shape index: {}]
  %s8 = inlined_call_operand.hbm [shape: f32[1,32], index: 8, kind: input, shape index: {}]
  %s9 = inlined_call_operand.vmem [shape: bf16[32,32], index: 9, kind: input, shape index: {}]
  %s10 = inlined_call_operand.hbm [shape: f32[1,32], index: 10, kind: input, shape index: {}]
  %s11 = inlined_call_operand.hbm [shape: f32[1,32], index: 11, kind: input, shape index: {}]
  %s12 = inlined_call_operand.hbm [shape: f32[1,32], index: 12, kind: input, shape index: {}]
  %s13 = inlined_call_operand.vmem [shape: bf16[32,128], index: 13, kind: input, shape index: {}]
  %s14 = inlined_call_operand.vmem [shape: f32[1,128], index: 14, kind: input, shape index: {}]
  %s15 = inlined_call_operand.vmem [shape: bf16[128,32], index: 15, kind: input, shape index: {}]
  %s16 = inlined_call_operand.vmem [shape: f32[1,32], index: 16, kind: input, shape index: {}]
  %s17 = inlined_call_operand.vmem [shape: f32[1,32], index: 17, kind: input, shape index: {}]
  %s18 = inlined_call_operand.vmem [shape: f32[1,32], index: 18, kind: input, shape index: {}]
  %s19 = inlined_call_operand.hbm [shape: f32[2,8,32], index: 19, kind: output, shape index: {}]
  %s20 = sld [smem:[#allocation0]]
  $region137: #{tpu_custom_call.1} parent=0
    _
  %s22 = ssub.s32 1, %s20
  %s23 = scalar_select 0, %s22, %s20
  $region1: #{tpu_custom_call.1} parent=0
    #allocation4 [shape = 'u8[1024]{0}', space=vmem, size = 0x400, scoped, tag = 'input window, operand 2']
    #allocation5 [shape = 's32[2]{0}', space=sflag, size = 0x8, scoped, tag = 'scoped memory for tpu_custom_call.1']
    #allocation6 [shape = 's32[2]{0}', space=sflag, size = 0x8, scoped, tag = 'scoped memory for tpu_custom_call.1']
    #allocation7 [shape = 'u8[512]{0}', space=vmem, size = 0x400, scoped, tag = 'input window, operand 6, single buffered']
    #allocation8 [shape = 's32[1]{0}', space=sflag, size = 0x4, scoped, tag = 'scoped memory for tpu_custom_call.1']
    #allocation9 [shape = 'u8[512]{0}', space=vmem, size = 0x400, scoped, tag = 'input window, operand 8, single buffered']
    #allocation10 [shape = 'u8[512]{0}', space=vmem, size = 0x400, scoped, tag = 'input window, operand 10, single buffered']
    #allocation11 [shape = 's32[1]{0}', space=sflag, size = 0x4, scoped, tag = 'scoped memory for tpu_custom_call.1']
    #allocation12 [shape = 'u8[512]{0}', space=vmem, size = 0x400, scoped, tag = 'input window, operand 11, single buffered']
    #allocation13 [shape = 'u8[512]{0}', space=vmem, size = 0x400, scoped, tag = 'input window, operand 12, single buffered']
    #allocation14 [shape = 's32[1]{0}', space=sflag, size = 0x4, scoped, tag = 'scoped memory for tpu_custom_call.1']
    #allocation15 [shape = 'u8[8192]{0}', space=vmem, size = 0x2000, scoped, tag = 'output window, operand 0']
    %24 = vsyncpa [#allocation5], 0
    %s25 = scalar_lea.sflag [#allocation5], 1
    %26 = vsyncpa %s25, 0
    %27 = vsyncpa [#allocation8], 0
    %28 = vsyncpa [#allocation11], 0
    %29 = vsyncpa [#allocation14], 0
    %30 = vsyncpa [#allocation6], 0
    %s31 = scalar_lea.sflag [#allocation6], 1
    %32 = vsyncpa %s31, 0
    loop: start=0, step=1, limit=4
    $region2: #{tpu_custom_call.1} parent=1 // loop_pre_header
      _
    $region3: #{tpu_custom_call.1} parent=1 // loop_header
      %s34 = sphi 0, %s38
      %p35 = scmp.ge.s32.totalorder %s34, 4
      %s41 = sphi 0, %s53
      %s42 = sphi 0, %s49
      %s43 = sphi 0, %s41
      %s44 = sphi 0, %s42
      %s45 = sphi 0, %s43
      %s46 = sphi 0, %s44
      %s58 = sphi 0, %s60
      %s61 = sphi 0, %s58
      %s62 = sphi 0, %s61
      %s78 = sphi 0, %s62
      %s84 = sphi 0, %s86
      %s87 = sphi 0, %s84
      %s88 = sphi 0, %s87
      %s104 = sphi 0, %s88
      %s110 = sphi 0, %s112
      %s113 = sphi 0, %s110
      %s114 = sphi 0, %s113
      %s130 = sphi 0, %s114
      %s134 = sphi 0, %s134
      %s136 = sphi 0, %s134
      %s137 = sphi 0, %s136
      %s151 = sphi 0, %s137
      %s155 = sphi 0, %s155
      %s157 = sphi 0, %s155
      %s158 = sphi 0, %s157
      %s172 = sphi 0, %s158
      %s176 = sphi 0, %s176
      %s178 = sphi 0, %s176
      %s179 = sphi 0, %s178
      %s193 = sphi 0, %s179
      %s197 = sphi 0, %s197
      %s199 = sphi 0, %s197
      %s200 = sphi 0, %s199
      %s214 = sphi 0, %s200
      %s218 = sphi 0, %s218
      %s220 = sphi 0, %s218
      %s221 = sphi 0, %s220
      %s235 = sphi 0, %s221
      %s239 = sphi 0, %s239
      %s241 = sphi 0, %s239
      %s242 = sphi 0, %s241
      %s256 = sphi 0, %s242
      %s260 = sphi 0, %s260
      %s262 = sphi 0, %s260
      %s263 = sphi 0, %s262
      %s277 = sphi 0, %s263
      %s281 = sphi 0, %s281
      %s283 = sphi 0, %s281
      %s284 = sphi 0, %s283
      %s298 = sphi 0, %s284
      %s302 = sphi 0, %s302
      %s304 = sphi 0, %s302
      %s305 = sphi 0, %s304
      %s319 = sphi 0, %s305
      %s323 = sphi 0, %s323
      %s325 = sphi 0, %s323
      %s326 = sphi 0, %s325
      %s340 = sphi 0, %s326
      %s344 = sphi 0, %s344
      %s346 = sphi 0, %s344
      %s347 = sphi 0, %s346
      %s361 = sphi 0, %s347
      %s365 = sphi 0, %s365
      %s367 = sphi 0, %s365
      %s368 = sphi 0, %s367
      %s382 = sphi 0, %s368
      %s386 = sphi 0, %s386
      %s388 = sphi 0, %s386
      %s389 = sphi 0, %s388
      %s403 = sphi 0, %s389
      %s407 = sphi 0, %s407
      %s409 = sphi 0, %s407
      %s410 = sphi 0, %s409
      %s424 = sphi 0, %s410
      %s428 = sphi 0, %s428
      %s430 = sphi 0, %s428
      %s431 = sphi 0, %s430
      %s445 = sphi 0, %s431
      %s449 = sphi 0, %s449
      %s451 = sphi 0, %s449
      %s452 = sphi 0, %s451
      %s466 = sphi 0, %s452
      %s474 = sphi 0, %s476
      %s477 = sphi 0, %s474
      %s478 = sphi 0, %s477
      %s494 = sphi 0, %s478
    $region4: #{tpu_custom_call.1} parent=1 // loop_header_branch
      %37 = sbr.rel (%p35) target = $region8
    $region5: #{tpu_custom_call.1} parent=1 // loop_body
      %s39 = ssub.s32 %s34, 1
      %s40 = ssub.s32 %s34, 2
      %s47 = sadd.s32 1, %s42
      %p48 = scmp.ge.s32.totalorder %s47, 1
      %s49 = scalar_select %p48, 0, %s47
      %s50 = sadd.s32 1, %s41
      %s51 = scalar_select %p48, %s50, %s41
      %p52 = scmp.ge.s32.totalorder %s51, 2
      %s53 = scalar_select %p52, 0, %s51
      %s54 = ssub.s32 %s41, %s53
      %s55 = ssub.s32 %s42, %s49
      %s56 = sor.u32 %s54, %s55
      %p57 = scmp.eq.s32.totalorder %s56, 0
      %s59 = sadd.s32 %s58, 1
      %s60 = scalar_select %p57, %s58, %s59
      %p63 = pneg %p57
      %p64 = scmp.eq.s32.totalorder %s34, 1
      %p65 = por %p63, %p64
      %p66 = scmp.ne.s32.totalorder %s58, %s61
      %p67 = scmp.eq.s32.totalorder %s34, 0
      %p68 = por %p66, %p67
      %p69 = scmp.ne.s32.totalorder %s58, %s61
      %p70 = scmp.eq.s32.totalorder %s39, 1
      %p71 = por %p69, %p70
      %p72 = scmp.ne.s32.totalorder %s61, %s62
      %p73 = scmp.eq.s32.totalorder %s39, 0
      %p74 = por %p72, %p73
      %p75 = scmp.ne.s32.totalorder %s61, %s62
      %p76 = scmp.eq.s32.totalorder %s40, 1
      %p77 = por %p75, %p76
      %p79 = scmp.ne.s32.totalorder %s62, %s78
      %p80 = scmp.eq.s32.totalorder %s40, 0
      %p81 = por %p79, %p80
      %s82 = ssub.s32 %s41, %s53
      %p83 = scmp.eq.s32.totalorder %s82, 0
      %s85 = sadd.s32 %s84, 1
      %s86 = scalar_select %p83, %s84, %s85
      %p89 = pneg %p83
      %p90 = scmp.eq.s32.totalorder %s34, 1
      %p91 = por %p89, %p90
      %p92 = scmp.ne.s32.totalorder %s84, %s87
      %p93 = scmp.eq.s32.totalorder %s34, 0
      %p94 = por %p92, %p93
      %p95 = scmp.ne.s32.totalorder %s84, %s87
      %p96 = scmp.eq.s32.totalorder %s39, 1
      %p97 = por %p95, %p96
      %p98 = scmp.ne.s32.totalorder %s87, %s88
      %p99 = scmp.eq.s32.totalorder %s39, 0
      %p100 = por %p98, %p99
      %p101 = scmp.ne.s32.totalorder %s87, %s88
      %p102 = scmp.eq.s32.totalorder %s40, 1
      %p103 = por %p101, %p102
      %p105 = scmp.ne.s32.totalorder %s88, %s104
      %p106 = scmp.eq.s32.totalorder %s40, 0
      %p107 = por %p105, %p106
      %s108 = ssub.s32 %s41, %s53
      %p109 = scmp.eq.s32.totalorder %s108, 0
      %s111 = sadd.s32 %s110, 1
      %s112 = scalar_select %p109, %s110, %s111
      %p115 = pneg %p109
      %p116 = scmp.eq.s32.totalorder %s34, 1
      %p117 = por %p115, %p116
      %p118 = scmp.ne.s32.totalorder %s110, %s113
      %p119 = scmp.eq.s32.totalorder %s34, 0
      %p120 = por %p118, %p119
      %p121 = scmp.ne.s32.totalorder %s110, %s113
      %p122 = scmp.eq.s32.totalorder %s39, 1
      %p123 = por %p121, %p122
      %p124 = scmp.ne.s32.totalorder %s113, %s114
      %p125 = scmp.eq.s32.totalorder %s39, 0
      %p126 = por %p124, %p125
      %p127 = scmp.ne.s32.totalorder %s113, %s114
      %p128 = scmp.eq.s32.totalorder %s40, 1
      %p129 = por %p127, %p128
      %p131 = scmp.ne.s32.totalorder %s114, %s130
      %p132 = scmp.eq.s32.totalorder %s40, 0
      %p133 = por %p131, %p132
      %s135 = sadd.s32 %s134, 1
      %p138 = scmp.eq.s32.totalorder %s34, 1
      %p139 = scmp.ne.s32.totalorder %s134, %s136
      %p140 = scmp.eq.s32.totalorder %s34, 0
      %p141 = por %p139, %p140
      %p142 = scmp.ne.s32.totalorder %s134, %s136
      %p143 = scmp.eq.s32.totalorder %s39, 1
      %p144 = por %p142, %p143
      %p145 = scmp.ne.s32.totalorder %s136, %s137
      %p146 = scmp.eq.s32.totalorder %s39, 0
      %p147 = por %p145, %p146
      %p148 = scmp.ne.s32.totalorder %s136, %s137
      %p149 = scmp.eq.s32.totalorder %s40, 1
      %p150 = por %p148, %p149
      %p152 = scmp.ne.s32.totalorder %s137, %s151
      %p153 = scmp.eq.s32.totalorder %s40, 0
      %p154 = por %p152, %p153
      %s156 = sadd.s32 %s155, 1
      %p159 = scmp.eq.s32.totalorder %s34, 1
      %p160 = scmp.ne.s32.totalorder %s155, %s157
      %p161 = scmp.eq.s32.totalorder %s34, 0
      %p162 = por %p160, %p161
      %p163 = scmp.ne.s32.totalorder %s155, %s157
      %p164 = scmp.eq.s32.totalorder %s39, 1
      %p165 = por %p163, %p164
      %p166 = scmp.ne.s32.totalorder %s157, %s158
      %p167 = scmp.eq.s32.totalorder %s39, 0
      %p168 = por %p166, %p167
      %p169 = scmp.ne.s32.totalorder %s157, %s158
      %p170 = scmp.eq.s32.totalorder %s40, 1
      %p171 = por %p169, %p170
      %p173 = scmp.ne.s32.totalorder %s158, %s172
      %p174 = scmp.eq.s32.totalorder %s40, 0
      %p175 = por %p173, %p174
      %s177 = sadd.s32 %s176, 1
      %p180 = scmp.eq.s32.totalorder %s34, 1
      %p181 = scmp.ne.s32.totalorder %s176, %s178
      %p182 = scmp.eq.s32.totalorder %s34, 0
      %p183 = por %p181, %p182
      %p184 = scmp.ne.s32.totalorder %s176, %s178
      %p185 = scmp.eq.s32.totalorder %s39, 1
      %p186 = por %p184, %p185
      %p187 = scmp.ne.s32.totalorder %s178, %s179
      %p188 = scmp.eq.s32.totalorder %s39, 0
      %p189 = por %p187, %p188
      %p190 = scmp.ne.s32.totalorder %s178, %s179
      %p191 = scmp.eq.s32.totalorder %s40, 1
      %p192 = por %p190, %p191
      %p194 = scmp.ne.s32.totalorder %s179, %s193
      %p195 = scmp.eq.s32.totalorder %s40, 0
      %p196 = por %p194, %p195
      %s198 = sadd.s32 %s197, 1
      %p201 = scmp.eq.s32.totalorder %s34, 1
      %p202 = scmp.ne.s32.totalorder %s197, %s199
      %p203 = scmp.eq.s32.totalorder %s34, 0
      %p204 = por %p202, %p203
      %p205 = scmp.ne.s32.totalorder %s197, %s199
      %p206 = scmp.eq.s32.totalorder %s39, 1
      %p207 = por %p205, %p206
      %p208 = scmp.ne.s32.totalorder %s199, %s200
      %p209 = scmp.eq.s32.totalorder %s39, 0
      %p210 = por %p208, %p209
      %p211 = scmp.ne.s32.totalorder %s199, %s200
      %p212 = scmp.eq.s32.totalorder %s40, 1
      %p213 = por %p211, %p212
      %p215 = scmp.ne.s32.totalorder %s200, %s214
      %p216 = scmp.eq.s32.totalorder %s40, 0
      %p217 = por %p215, %p216
      %s219 = sadd.s32 %s218, 1
      %p222 = scmp.eq.s32.totalorder %s34, 1
      %p223 = scmp.ne.s32.totalorder %s218, %s220
      %p224 = scmp.eq.s32.totalorder %s34, 0
      %p225 = por %p223, %p224
      %p226 = scmp.ne.s32.totalorder %s218, %s220
      %p227 = scmp.eq.s32.totalorder %s39, 1
      %p228 = por %p226, %p227
      %p229 = scmp.ne.s32.totalorder %s220, %s221
      %p230 = scmp.eq.s32.totalorder %s39, 0
      %p231 = por %p229, %p230
      %p232 = scmp.ne.s32.totalorder %s220, %s221
      %p233 = scmp.eq.s32.totalorder %s40, 1
      %p234 = por %p232, %p233
      %p236 = scmp.ne.s32.totalorder %s221, %s235
      %p237 = scmp.eq.s32.totalorder %s40, 0
      %p238 = por %p236, %p237
      %s240 = sadd.s32 %s239, 1
      %p243 = scmp.eq.s32.totalorder %s34, 1
      %p244 = scmp.ne.s32.totalorder %s239, %s241
      %p245 = scmp.eq.s32.totalorder %s34, 0
      %p246 = por %p244, %p245
      %p247 = scmp.ne.s32.totalorder %s239, %s241
      %p248 = scmp.eq.s32.totalorder %s39, 1
      %p249 = por %p247, %p248
      %p250 = scmp.ne.s32.totalorder %s241, %s242
      %p251 = scmp.eq.s32.totalorder %s39, 0
      %p252 = por %p250, %p251
      %p253 = scmp.ne.s32.totalorder %s241, %s242
      %p254 = scmp.eq.s32.totalorder %s40, 1
      %p255 = por %p253, %p254
      %p257 = scmp.ne.s32.totalorder %s242, %s256
      %p258 = scmp.eq.s32.totalorder %s40, 0
      %p259 = por %p257, %p258
      %s261 = sadd.s32 %s260, 1
      %p264 = scmp.eq.s32.totalorder %s34, 1
      %p265 = scmp.ne.s32.totalorder %s260, %s262
      %p266 = scmp.eq.s32.totalorder %s34, 0
      %p267 = por %p265, %p266
      %p268 = scmp.ne.s32.totalorder %s260, %s262
      %p269 = scmp.eq.s32.totalorder %s39, 1
      %p270 = por %p268, %p269
      %p271 = scmp.ne.s32.totalorder %s262, %s263
      %p272 = scmp.eq.s32.totalorder %s39, 0
      %p273 = por %p271, %p272
      %p274 = scmp.ne.s32.totalorder %s262, %s263
      %p275 = scmp.eq.s32.totalorder %s40, 1
      %p276 = por %p274, %p275
      %p278 = scmp.ne.s32.totalorder %s263, %s277
      %p279 = scmp.eq.s32.totalorder %s40, 0
      %p280 = por %p278, %p279
      %s282 = sadd.s32 %s281, 1
      %p285 = scmp.eq.s32.totalorder %s34, 1
      %p286 = scmp.ne.s32.totalorder %s281, %s283
      %p287 = scmp.eq.s32.totalorder %s34, 0
      %p288 = por %p286, %p287
      %p289 = scmp.ne.s32.totalorder %s281, %s283
      %p290 = scmp.eq.s32.totalorder %s39, 1
      %p291 = por %p289, %p290
      %p292 = scmp.ne.s32.totalorder %s283, %s284
      %p293 = scmp.eq.s32.totalorder %s39, 0
      %p294 = por %p292, %p293
      %p295 = scmp.ne.s32.totalorder %s283, %s284
      %p296 = scmp.eq.s32.totalorder %s40, 1
      %p297 = por %p295, %p296
      %p299 = scmp.ne.s32.totalorder %s284, %s298
      %p300 = scmp.eq.s32.totalorder %s40, 0
      %p301 = por %p299, %p300
      %s303 = sadd.s32 %s302, 1
      %p306 = scmp.eq.s32.totalorder %s34, 1
      %p307 = scmp.ne.s32.totalorder %s302, %s304
      %p308 = scmp.eq.s32.totalorder %s34, 0
      %p309 = por %p307, %p308
      %p310 = scmp.ne.s32.totalorder %s302, %s304
      %p311 = scmp.eq.s32.totalorder %s39, 1
      %p312 = por %p310, %p311
      %p313 = scmp.ne.s32.totalorder %s304, %s305
      %p314 = scmp.eq.s32.totalorder %s39, 0
      %p315 = por %p313, %p314
      %p316 = scmp.ne.s32.totalorder %s304, %s305
      %p317 = scmp.eq.s32.totalorder %s40, 1
      %p318 = por %p316, %p317
      %p320 = scmp.ne.s32.totalorder %s305, %s319
      %p321 = scmp.eq.s32.totalorder %s40, 0
      %p322 = por %p320, %p321
      %s324 = sadd.s32 %s323, 1
      %p327 = scmp.eq.s32.totalorder %s34, 1
      %p328 = scmp.ne.s32.totalorder %s323, %s325
      %p329 = scmp.eq.s32.totalorder %s34, 0
      %p330 = por %p328, %p329
      %p331 = scmp.ne.s32.totalorder %s323, %s325
      %p332 = scmp.eq.s32.totalorder %s39, 1
      %p333 = por %p331, %p332
      %p334 = scmp.ne.s32.totalorder %s325, %s326
      %p335 = scmp.eq.s32.totalorder %s39, 0
      %p336 = por %p334, %p335
      %p337 = scmp.ne.s32.totalorder %s325, %s326
      %p338 = scmp.eq.s32.totalorder %s40, 1
      %p339 = por %p337, %p338
      %p341 = scmp.ne.s32.totalorder %s326, %s340
      %p342 = scmp.eq.s32.totalorder %s40, 0
      %p343 = por %p341, %p342
      %s345 = sadd.s32 %s344, 1
      %p348 = scmp.eq.s32.totalorder %s34, 1
      %p349 = scmp.ne.s32.totalorder %s344, %s346
      %p350 = scmp.eq.s32.totalorder %s34, 0
      %p351 = por %p349, %p350
      %p352 = scmp.ne.s32.totalorder %s344, %s346
      %p353 = scmp.eq.s32.totalorder %s39, 1
      %p354 = por %p352, %p353
      %p355 = scmp.ne.s32.totalorder %s346, %s347
      %p356 = scmp.eq.s32.totalorder %s39, 0
      %p357 = por %p355, %p356
      %p358 = scmp.ne.s32.totalorder %s346, %s347
      %p359 = scmp.eq.s32.totalorder %s40, 1
      %p360 = por %p358, %p359
      %p362 = scmp.ne.s32.totalorder %s347, %s361
      %p363 = scmp.eq.s32.totalorder %s40, 0
      %p364 = por %p362, %p363
      %s366 = sadd.s32 %s365, 1
      %p369 = scmp.eq.s32.totalorder %s34, 1
      %p370 = scmp.ne.s32.totalorder %s365, %s367
      %p371 = scmp.eq.s32.totalorder %s34, 0
      %p372 = por %p370, %p371
      %p373 = scmp.ne.s32.totalorder %s365, %s367
      %p374 = scmp.eq.s32.totalorder %s39, 1
      %p375 = por %p373, %p374
      %p376 = scmp.ne.s32.totalorder %s367, %s368
      %p377 = scmp.eq.s32.totalorder %s39, 0
      %p378 = por %p376, %p377
      %p379 = scmp.ne.s32.totalorder %s367, %s368
      %p380 = scmp.eq.s32.totalorder %s40, 1
      %p381 = por %p379, %p380
      %p383 = scmp.ne.s32.totalorder %s368, %s382
      %p384 = scmp.eq.s32.totalorder %s40, 0
      %p385 = por %p383, %p384
      %s387 = sadd.s32 %s386, 1
      %p390 = scmp.eq.s32.totalorder %s34, 1
      %p391 = scmp.ne.s32.totalorder %s386, %s388
      %p392 = scmp.eq.s32.totalorder %s34, 0
      %p393 = por %p391, %p392
      %p394 = scmp.ne.s32.totalorder %s386, %s388
      %p395 = scmp.eq.s32.totalorder %s39, 1
      %p396 = por %p394, %p395
      %p397 = scmp.ne.s32.totalorder %s388, %s389
      %p398 = scmp.eq.s32.totalorder %s39, 0
      %p399 = por %p397, %p398
      %p400 = scmp.ne.s32.totalorder %s388, %s389
      %p401 = scmp.eq.s32.totalorder %s40, 1
      %p402 = por %p400, %p401
      %p404 = scmp.ne.s32.totalorder %s389, %s403
      %p405 = scmp.eq.s32.totalorder %s40, 0
      %p406 = por %p404, %p405
      %s408 = sadd.s32 %s407, 1
      %p411 = scmp.eq.s32.totalorder %s34, 1
      %p412 = scmp.ne.s32.totalorder %s407, %s409
      %p413 = scmp.eq.s32.totalorder %s34, 0
      %p414 = por %p412, %p413
      %p415 = scmp.ne.s32.totalorder %s407, %s409
      %p416 = scmp.eq.s32.totalorder %s39, 1
      %p417 = por %p415, %p416
      %p418 = scmp.ne.s32.totalorder %s409, %s410
      %p419 = scmp.eq.s32.totalorder %s39, 0
      %p420 = por %p418, %p419
      %p421 = scmp.ne.s32.totalorder %s409, %s410
      %p422 = scmp.eq.s32.totalorder %s40, 1
      %p423 = por %p421, %p422
      %p425 = scmp.ne.s32.totalorder %s410, %s424
      %p426 = scmp.eq.s32.totalorder %s40, 0
      %p427 = por %p425, %p426
      %s429 = sadd.s32 %s428, 1
      %p432 = scmp.eq.s32.totalorder %s34, 1
      %p433 = scmp.ne.s32.totalorder %s428, %s430
      %p434 = scmp.eq.s32.totalorder %s34, 0
      %p435 = por %p433, %p434
      %p436 = scmp.ne.s32.totalorder %s428, %s430
      %p437 = scmp.eq.s32.totalorder %s39, 1
      %p438 = por %p436, %p437
      %p439 = scmp.ne.s32.totalorder %s430, %s431
      %p440 = scmp.eq.s32.totalorder %s39, 0
      %p441 = por %p439, %p440
      %p442 = scmp.ne.s32.totalorder %s430, %s431
      %p443 = scmp.eq.s32.totalorder %s40, 1
      %p444 = por %p442, %p443
      %p446 = scmp.ne.s32.totalorder %s431, %s445
      %p447 = scmp.eq.s32.totalorder %s40, 0
      %p448 = por %p446, %p447
      %s450 = sadd.s32 %s449, 1
      %p453 = scmp.eq.s32.totalorder %s34, 1
      %p454 = scmp.ne.s32.totalorder %s449, %s451
      %p455 = scmp.eq.s32.totalorder %s34, 0
      %p456 = por %p454, %p455
      %p457 = scmp.ne.s32.totalorder %s449, %s451
      %p458 = scmp.eq.s32.totalorder %s39, 1
      %p459 = por %p457, %p458
      %p460 = scmp.ne.s32.totalorder %s451, %s452
      %p461 = scmp.eq.s32.totalorder %s39, 0
      %p462 = por %p460, %p461
      %p463 = scmp.ne.s32.totalorder %s451, %s452
      %p464 = scmp.eq.s32.totalorder %s40, 1
      %p465 = por %p463, %p464
      %p467 = scmp.ne.s32.totalorder %s452, %s466
      %p468 = scmp.eq.s32.totalorder %s40, 0
      %p469 = por %p467, %p468
      %s470 = ssub.s32 %s41, %s53
      %s471 = ssub.s32 %s42, %s49
      %s472 = sor.u32 %s470, %s471
      %p473 = scmp.eq.s32.totalorder %s472, 0
      %s475 = sadd.s32 %s474, 1
      %s476 = scalar_select %p473, %s474, %s475
      %p479 = pneg %p473
      %p480 = scmp.eq.s32.totalorder %s34, 1
      %p481 = por %p479, %p480
      %p482 = scmp.ne.s32.totalorder %s474, %s477
      %p483 = scmp.eq.s32.totalorder %s34, 0
      %p484 = por %p482, %p483
      %p485 = scmp.ne.s32.totalorder %s474, %s477
      %p486 = scmp.eq.s32.totalorder %s39, 1
      %p487 = por %p485, %p486
      %p488 = scmp.ne.s32.totalorder %s477, %s478
      %p489 = scmp.eq.s32.totalorder %s39, 0
      %p490 = por %p488, %p489
      %p491 = scmp.ne.s32.totalorder %s477, %s478
      %p492 = scmp.eq.s32.totalorder %s40, 1
      %p493 = por %p491, %p492
      %p495 = scmp.ne.s32.totalorder %s478, %s494
      %p496 = scmp.eq.s32.totalorder %s40, 0
      %p497 = por %p495, %p496
      %p498 = scmp.le.s32.totalorder 1, %s34
      %p499 = scmp.lt.s32.totalorder %s34, 3
      %p500 = pnand %p498, %p499
      %p501 = pneg %p500
      // Predicated region
      $region9: #{tpu_custom_call.1} parent=5 // pred_check
        _
      $region10: #{tpu_custom_call.1} parent=5 // pred_check_branch
        %503 = sbr.rel (%p500) target = $region12
      $region11: #{tpu_custom_call.1} parent=5 // pred_region
        %s504 = ssub.s32 %s34, 1
        // Predicated region
        $region13: #{tpu_custom_call.1} parent=11 // pred_check
          %p505 = pneg %p147
        $region14: #{tpu_custom_call.1} parent=11 // pred_check_branch
          %507 = sbr.rel (%p505) target = $region16
        $region15: #{tpu_custom_call.1} parent=11 // pred_region
          _
        $region16: #{tpu_custom_call.1} parent=11 // pred_fallthru
          _
        // Predicated region
        $region17: #{tpu_custom_call.1} parent=11 // pred_check
          %p508 = pneg %p168
        $region18: #{tpu_custom_call.1} parent=11 // pred_check_branch
          %510 = sbr.rel (%p508) target = $region20
        $region19: #{tpu_custom_call.1} parent=11 // pred_region
          _
        $region20: #{tpu_custom_call.1} parent=11 // pred_fallthru
          _
        // Predicated region
        $region21: #{tpu_custom_call.1} parent=11 // pred_check
          %p511 = pneg %p189
        $region22: #{tpu_custom_call.1} parent=11 // pred_check_branch
          %513 = sbr.rel (%p511) target = $region24
        $region23: #{tpu_custom_call.1} parent=11 // pred_region
          _
        $region24: #{tpu_custom_call.1} parent=11 // pred_fallthru
          _
        // Predicated region
        $region25: #{tpu_custom_call.1} parent=11 // pred_check
          %p514 = pneg %p210
        $region26: #{tpu_custom_call.1} parent=11 // pred_check_branch
          %516 = sbr.rel (%p514) target = $region28
        $region27: #{tpu_custom_call.1} parent=11 // pred_region
          %s518 = ssub.s32 16, 16
          %519 = vsyncadd [#allocation8], %s518
          %s521 = sshll.u32 [#allocation7], 4
          %s522 = int_to_ptr.vmem [resolvable:$true] %s521
          %524 = dma.hbm_to_vmem [thread:$0]  %s6, 16, %s522, [#allocation8]
        $region28: #{tpu_custom_call.1} parent=11 // pred_fallthru
          _
        // Predicated region
        $region29: #{tpu_custom_call.1} parent=11 // pred_check
          %p525 = pneg %p231
        $region30: #{tpu_custom_call.1} parent=11 // pred_check_branch
          %527 = sbr.rel (%p525) target = $region32
        $region31: #{tpu_custom_call.1} parent=11 // pred_region
          _
        $region32: #{tpu_custom_call.1} parent=11 // pred_fallthru
          _
        // Predicated region
        $region33: #{tpu_custom_call.1} parent=11 // pred_check
          %p528 = pneg %p252
        $region34: #{tpu_custom_call.1} parent=11 // pred_check_branch
          %530 = sbr.rel (%p528) target = $region36
        $region35: #{tpu_custom_call.1} parent=11 // pred_region
          %s532 = ssub.s32 16, 16
          %533 = vsyncadd [#allocation8], %s532
          %s535 = sshll.u32 [#allocation9], 4
          %s536 = int_to_ptr.vmem [resolvable:$true] %s535
          %538 = dma.hbm_to_vmem [thread:$0]  %s8, 16, %s536, [#allocation8]
        $region36: #{tpu_custom_call.1} parent=11 // pred_fallthru
          _
        // Predicated region
        $region37: #{tpu_custom_call.1} parent=11 // pred_check
          %p539 = pneg %p273
        $region38: #{tpu_custom_call.1} parent=11 // pred_check_branch
          %541 = sbr.rel (%p539) target = $region40
        $region39: #{tpu_custom_call.1} parent=11 // pred_region
          _
        $region40: #{tpu_custom_call.1} parent=11 // pred_fallthru
          _
        // Predicated region
        $region41: #{tpu_custom_call.1} parent=11 // pred_check
          %p542 = pneg %p294
        $region42: #{tpu_custom_call.1} parent=11 // pred_check_branch
          %544 = sbr.rel (%p542) target = $region44
        $region43: #{tpu_custom_call.1} parent=11 // pred_region
          %s546 = ssub.s32 16, 16
          %547 = vsyncadd [#allocation11], %s546
          %s549 = sshll.u32 [#allocation10], 4
          %s550 = int_to_ptr.vmem [resolvable:$true] %s549
          %552 = dma.hbm_to_vmem [thread:$0]  %s10, 16, %s550, [#allocation11]
        $region44: #{tpu_custom_call.1} parent=11 // pred_fallthru
          _
        // Predicated region
        $region45: #{tpu_custom_call.1} parent=11 // pred_check
          %p553 = pneg %p315
        $region46: #{tpu_custom_call.1} parent=11 // pred_check_branch
          %555 = sbr.rel (%p553) target = $region48
        $region47: #{tpu_custom_call.1} parent=11 // pred_region
          %s557 = ssub.s32 16, 16
          %558 = vsyncadd [#allocation11], %s557
          %s560 = sshll.u32 [#allocation12], 4
          %s561 = int_to_ptr.vmem [resolvable:$true] %s560
          %563 = dma.hbm_to_vmem [thread:$0]  %s11, 16, %s561, [#allocation11]
        $region48: #{tpu_custom_call.1} parent=11 // pred_fallthru
          _
        // Predicated region
        $region49: #{tpu_custom_call.1} parent=11 // pred_check
          %p564 = pneg %p336
        $region50: #{tpu_custom_call.1} parent=11 // pred_check_branch
          %566 = sbr.rel (%p564) target = $region52
        $region51: #{tpu_custom_call.1} parent=11 // pred_region
          %s568 = ssub.s32 16, 16
          %569 = vsyncadd [#allocation14], %s568
          %s571 = sshll.u32 [#allocation13], 4
          %s572 = int_to_ptr.vmem [resolvable:$true] %s571
          %574 = dma.hbm_to_vmem [thread:$0]  %s12, 16, %s572, [#allocation14]
        $region52: #{tpu_custom_call.1} parent=11 // pred_fallthru
          _
        // Predicated region
        $region53: #{tpu_custom_call.1} parent=11 // pred_check
          %p575 = pneg %p357
        $region54: #{tpu_custom_call.1} parent=11 // pred_check_branch
          %577 = sbr.rel (%p575) target = $region56
        $region55: #{tpu_custom_call.1} parent=11 // pred_region
          _
        $region56: #{tpu_custom_call.1} parent=11 // pred_fallthru
          _
        // Predicated region
        $region57: #{tpu_custom_call.1} parent=11 // pred_check
          %p578 = pneg %p378
        $region58: #{tpu_custom_call.1} parent=11 // pred_check_branch
          %580 = sbr.rel (%p578) target = $region60
        $region59: #{tpu_custom_call.1} parent=11 // pred_region
          _
        $region60: #{tpu_custom_call.1} parent=11 // pred_fallthru
          _
        // Predicated region
        $region61: #{tpu_custom_call.1} parent=11 // pred_check
          %p581 = pneg %p399
        $region62: #{tpu_custom_call.1} parent=11 // pred_check_branch
          %583 = sbr.rel (%p581) target = $region64
        $region63: #{tpu_custom_call.1} parent=11 // pred_region
          _
        $region64: #{tpu_custom_call.1} parent=11 // pred_fallthru
          _
        // Predicated region
        $region65: #{tpu_custom_call.1} parent=11 // pred_check
          %p584 = pneg %p420
        $region66: #{tpu_custom_call.1} parent=11 // pred_check_branch
          %586 = sbr.rel (%p584) target = $region68
        $region67: #{tpu_custom_call.1} parent=11 // pred_region
          _
        $region68: #{tpu_custom_call.1} parent=11 // pred_fallthru
          _
        // Predicated region
        $region69: #{tpu_custom_call.1} parent=11 // pred_check
          %p587 = pneg %p441
        $region70: #{tpu_custom_call.1} parent=11 // pred_check_branch
          %589 = sbr.rel (%p587) target = $region72
        $region71: #{tpu_custom_call.1} parent=11 // pred_region
          _
        $region72: #{tpu_custom_call.1} parent=11 // pred_fallthru
          _
        // Predicated region
        $region73: #{tpu_custom_call.1} parent=11 // pred_check
          %p590 = pneg %p462
        $region74: #{tpu_custom_call.1} parent=11 // pred_check_branch
          %592 = sbr.rel (%p590) target = $region76
        $region75: #{tpu_custom_call.1} parent=11 // pred_region
          _
        $region76: #{tpu_custom_call.1} parent=11 // pred_fallthru
          _
      $region12: #{tpu_custom_call.1} parent=5 // pred_fallthru
        _
      %p593 = scmp.lt.s32.totalorder %s34, 2
      // Predicated region
      $region77: #{tpu_custom_call.1} parent=5 // pred_check
        %p594 = pneg %p593
      $region78: #{tpu_custom_call.1} parent=5 // pred_check_branch
        %596 = sbr.rel (%p594) target = $region80
      $region79: #{tpu_custom_call.1} parent=5 // pred_region
        // Predicated region
        $region81: #{tpu_custom_call.1} parent=79 // pred_check
          %p597 = pneg %p68
        $region82: #{tpu_custom_call.1} parent=79 // pred_check_branch
          %599 = sbr.rel (%p597) target = $region84
        $region83: #{tpu_custom_call.1} parent=79 // pred_region
          %p600 = scmp.lt.s32.totalorder %s41, 1
          %s601 = scalar_select %p600, %s41, 1
          %p602 = scmp.lt.s32.totalorder %s42, 0
          %s603 = scalar_select %p602, %s42, 0
          %s604 = sadd.s32 %s603, %s601
          %s605 = smul.addr %s604, 8
          %s606 = scalar_lea.vmem %s0, %s605
        $region84: #{tpu_custom_call.1} parent=79 // pred_fallthru
          _
        // Predicated region
        $region85: #{tpu_custom_call.1} parent=79 // pred_check
          %p607 = pneg %p94
        $region86: #{tpu_custom_call.1} parent=79 // pred_check_branch
          %609 = sbr.rel (%p607) target = $region88
        $region87: #{tpu_custom_call.1} parent=79 // pred_region
          %p610 = scmp.lt.s32.totalorder %s41, 1
          %s611 = scalar_select %p610, %s41, 1
          %s612 = smul.addr %s611, 8
          %s613 = scalar_lea.vmem %s1, %s612
        $region88: #{tpu_custom_call.1} parent=79 // pred_fallthru
          _
        // Predicated region
        $region89: #{tpu_custom_call.1} parent=79 // pred_check
          %p614 = pneg %p120
        $region90: #{tpu_custom_call.1} parent=79 // pred_check_branch
          %616 = sbr.rel (%p614) target = $region92
        $region91: #{tpu_custom_call.1} parent=79 // pred_region
          %s617 = sand.u32 %s110, 1
          %s618 = scalar_lea.sflag [#allocation5], %s617
          %s619 = sand.u32 %s110, 1
          %s620 = scalar_lea.vmem [#allocation4], %s619
          %s622 = ssub.s32 16, 16
          %623 = vsyncadd %s618, %s622
          %s624 = smul.addr %s41, 16
          %s625 = scalar_lea.hbm %s2, %s624
          %s627 = sshll.u32 %s620, 4
          %s628 = int_to_ptr.vmem [resolvable:$true] %s627
          %630 = dma.hbm_to_vmem [thread:$0]  %s625, 16, %s628, %s618
        $region92: #{tpu_custom_call.1} parent=79 // pred_fallthru
          _
      $region80: #{tpu_custom_call.1} parent=5 // pred_fallthru
        _
      %p631 = scmp.le.s32.totalorder 1, %s34
      %p632 = scmp.lt.s32.totalorder %s34, 3
      %p633 = pnand %p631, %p632
      %p634 = pneg %p633
      // Predicated region
      $region93: #{tpu_custom_call.1} parent=5 // pred_check
        _
      $region94: #{tpu_custom_call.1} parent=5 // pred_check_branch
        %636 = sbr.rel (%p633) target = $region96
      $region95: #{tpu_custom_call.1} parent=5 // pred_region
        %s637 = ssub.s32 %s34, 1
        %s638 = sand.u32 %s113, 1
        %s639 = scalar_lea.sflag [#allocation5], %s638
        %s640 = sand.u32 %s113, 1
        %s641 = scalar_lea.vmem [#allocation4], %s640
        // Predicated region
        $region97: #{tpu_custom_call.1} parent=95 // pred_check
          %p642 = pneg %p126
        $region98: #{tpu_custom_call.1} parent=95 // pred_check_branch
          %644 = sbr.rel (%p642) target = $region100
        $region99: #{tpu_custom_call.1} parent=95 // pred_region
          %645 = dma.done %s639, 16
        $region100: #{tpu_custom_call.1} parent=95 // pred_fallthru
          _
        // Predicated region
        $region101: #{tpu_custom_call.1} parent=95 // pred_check
          %p646 = pneg %p210
        $region102: #{tpu_custom_call.1} parent=95 // pred_check_branch
          %648 = sbr.rel (%p646) target = $region104
        $region103: #{tpu_custom_call.1} parent=95 // pred_region
          %649 = dma.done [#allocation8], 16
        $region104: #{tpu_custom_call.1} parent=95 // pred_fallthru
          _
        // Predicated region
        $region105: #{tpu_custom_call.1} parent=95 // pred_check
          %p650 = pneg %p252
        $region106: #{tpu_custom_call.1} parent=95 // pred_check_branch
          %652 = sbr.rel (%p650) target = $region108
        $region107: #{tpu_custom_call.1} parent=95 // pred_region
          %653 = dma.done [#allocation8], 16
        $region108: #{tpu_custom_call.1} parent=95 // pred_fallthru
          _
        // Predicated region
        $region109: #{tpu_custom_call.1} parent=95 // pred_check
          %p654 = pneg %p294
        $region110: #{tpu_custom_call.1} parent=95 // pred_check_branch
          %656 = sbr.rel (%p654) target = $region112
        $region111: #{tpu_custom_call.1} parent=95 // pred_region
          %657 = dma.done [#allocation11], 16
        $region112: #{tpu_custom_call.1} parent=95 // pred_fallthru
          _
        // Predicated region
        $region113: #{tpu_custom_call.1} parent=95 // pred_check
          %p658 = pneg %p315
        $region114: #{tpu_custom_call.1} parent=95 // pred_check_branch
          %660 = sbr.rel (%p658) target = $region116
        $region115: #{tpu_custom_call.1} parent=95 // pred_region
          %661 = dma.done [#allocation11], 16
        $region116: #{tpu_custom_call.1} parent=95 // pred_fallthru
          _
        // Predicated region
        $region117: #{tpu_custom_call.1} parent=95 // pred_check
          %p662 = pneg %p336
        $region118: #{tpu_custom_call.1} parent=95 // pred_check_branch
          %664 = sbr.rel (%p662) target = $region120
        $region119: #{tpu_custom_call.1} parent=95 // pred_region
          %665 = dma.done [#allocation14], 16
        $region120: #{tpu_custom_call.1} parent=95 // pred_fallthru
          _
        %p666 = scmp.lt.s32.totalorder %s43, 1
        %s667 = scalar_select %p666, %s43, 1
        %p668 = scmp.lt.s32.totalorder %s44, 0
        %s669 = scalar_select %p668, %s44, 0
        %s670 = sadd.s32 %s669, %s667
        %s671 = smul.addr %s670, 8
        %s672 = scalar_lea.vmem %s0, %s671
        %p673 = pneg %p74
        %p674 = pneg %p71
        %p675 = scmp.lt.s32.totalorder %s43, 1
        %s676 = scalar_select %p675, %s43, 1
        %s677 = smul.addr %s676, 8
        %s678 = scalar_lea.vmem %s1, %s677
        %p679 = pneg %p100
        %p680 = pneg %p97
        %s681 = sand.u32 %s113, 1
        %s682 = scalar_lea.sflag [#allocation5], %s681
        %s683 = sand.u32 %s113, 1
        %s684 = scalar_lea.vmem [#allocation4], %s683
        %p685 = pneg %p126
        %p686 = pneg %p123
        %p687 = pneg %p147
        %p688 = pneg %p144
        %p689 = pneg %p168
        %p690 = pneg %p165
        %p691 = pneg %p189
        %p692 = pneg %p186
        %p693 = pneg %p210
        %p694 = pneg %p207
        %p695 = pneg %p231
        %p696 = pneg %p228
        %p697 = pneg %p252
        %p698 = pneg %p249
        %p699 = pneg %p273
        %p700 = pneg %p270
        %p701 = pneg %p294
        %p702 = pneg %p291
        %p703 = pneg %p315
        %p704 = pneg %p312
        %p705 = pneg %p336
        %p706 = pneg %p333
        %p707 = pneg %p357
        %p708 = pneg %p354
        %p709 = pneg %p378
        %p710 = pneg %p375
        %p711 = pneg %p399
        %p712 = pneg %p396
        %p713 = pneg %p420
        %p714 = pneg %p417
        %p715 = pneg %p441
        %p716 = pneg %p438
        %p717 = pneg %p462
        %p718 = pneg %p459
        %p719 = pneg %p490
        %p720 = pneg %p487
        %s721 = sand.u32 %s477, 1
        %s722 = scalar_lea.sflag [#allocation6], %s721
        %s723 = sand.u32 %s477, 1
        %s724 = smul.addr %s723, 8
        %s725 = scalar_lea.vmem [#allocation15], %s724
        %p726 = scmp.lt.s32.totalorder %s43, 1
        %s727 = scalar_select %p726, %s43, 1
        %p728 = scmp.lt.s32.totalorder %s44, 0
        %s729 = scalar_select %p728, %s44, 0
        %s730 = sadd.s32 %s729, %s727
        %s731 = smul.addr %s730, 8
        %s732 = scalar_lea.vmem %s0, %s731
        %p733 = scmp.lt.s32.totalorder %s43, 1
        %s734 = scalar_select %p733, %s43, 1
        %s735 = smul.addr %s734, 8
        %s736 = scalar_lea.vmem %s1, %s735
        %p738 = scmp.eq.s32.totalorder %s44, 0
        // Predicated region
        $region121: #{tpu_custom_call.1} parent=95 // pred_check
          %p739 = pneg %p738
        $region122: #{tpu_custom_call.1} parent=95 // pred_check_branch
          %741 = sbr.rel (%p739) target = $region124
        $region123: #{tpu_custom_call.1} parent=95 // pred_region
          %v742 = vld [vmem:[%s736] sm:$0xff]
          %v743 = vpack.c.bf16 %v742, %v742
          %v744 = vld [vmem:[%s5] sm:$0xf]
          %v745 = vld [vmem:[%s5 + $0x4] sm:$0xf]
          %v746 = vld [vmem:[%s5 + $0x8] sm:$0xf]
          %v747 = vld [vmem:[%s5 + $0xc] sm:$0xf]
          %v748 = vld [vmem:[#allocation7] sm:$0x1]
          %v750 = vlaneseq
          %v751 = vshrl.u32 %v750, 7
          %v752 = vsub.s32 0, %v751
          %v753 = vrot.slane %v748, %v752
          %v759 = vunpack.c.l.b16 %v744
          %v760 = vunpack.c.l.b16 %v745
          %v761 = vunpack.c.l.b16 %v746
          %v762 = vunpack.c.l.b16 %v747
          %v763 = vpack.c.b16 %v760, %v759
          %v764 = vpack.c.b16 %v762, %v761
          %vm767 = vcmask 261120
          %v769 = vsel %vm767, %v743, 0
          %771 = vmatprep.subr.bf16.mxu0 0
          %772 = vmatpush1.bf16.msra.mxu0 %v763
          %773 = vmatprep.subr.bf16.mxu0 0
          %774 = vmatpush1.bf16.msra.mxu0 %v764
          %775 = vmatprep.subr.bf16.mxu0 0
          %776 = vmatpush1.bf16.msra.mxu0 0
          %777 = vmatprep.subr.bf16.mxu0 0
          %778 = vmatpush1.bf16.msra.mxu0 0
          %779 = vmatprep.subr.bf16.mxu0 0
          %780 = vmatpush1.bf16.msra.mxu0 0
          %781 = vmatprep.subr.bf16.mxu0 0
          %782 = vmatpush1.bf16.msra.mxu0 0
          %783 = vmatprep.subr.bf16.mxu0 0
          %784 = vmatpush1.bf16.msra.mxu0 0
          %785 = vmatprep.subr.bf16.mxu0 0
          %786 = vmatpush1.bf16.msra.mxu0 0
          %787 = vmatprep.subr.bf16.mxu0 0
          %788 = vmatpush1.bf16.msra.mxu0 0
          %789 = vmatprep.subr.bf16.mxu0 0
          %790 = vmatpush1.bf16.msra.mxu0 0
          %791 = vmatprep.subr.bf16.mxu0 0
          %792 = vmatpush1.bf16.msra.mxu0 0
          %793 = vmatprep.subr.bf16.mxu0 0
          %794 = vmatpush1.bf16.msra.mxu0 0
          %795 = vmatprep.subr.bf16.mxu0 0
          %796 = vmatpush1.bf16.msra.mxu0 0
          %797 = vmatprep.subr.bf16.mxu0 0
          %798 = vmatpush1.bf16.msra.mxu0 0
          %799 = vmatprep.subr.bf16.mxu0 0
          %800 = vmatpush1.bf16.msra.mxu0 0
          %801 = vmatprep.subr.bf16.mxu0 0
          %802 = vmatpush1.bf16.msra.mxu0 0
          %803 = vmatprep.mubr.bf16.mxu0 0
          %804 = vmatmul.mubr.bf16.gmra.mrb[0].mxu0 %v769
          %v805 = vpop.f32.mrb[0].mxu0
          %v806 = vadd.f32 %v753, %v805
          %v807 = vpop.f32.mrb[0].mxu0
          %v808 = vpop.f32.mrb[0].mxu0
          %v809 = vpop.f32.mrb[0].mxu0
          %810 = vdwg.mxu0
          %v811 = vld [vmem:[%s7] sm:$0xf]
          %v812 = vld [vmem:[%s7 + $0x4] sm:$0xf]
          %v813 = vld [vmem:[%s7 + $0x8] sm:$0xf]
          %v814 = vld [vmem:[%s7 + $0xc] sm:$0xf]
          %v815 = vld [vmem:[#allocation9] sm:$0x1]
          %v817 = vlaneseq
          %v818 = vshrl.u32 %v817, 7
          %v819 = vsub.s32 0, %v818
          %v820 = vrot.slane %v815, %v819
          %v826 = vunpack.c.l.b16 %v811
          %v827 = vunpack.c.l.b16 %v812
          %v828 = vunpack.c.l.b16 %v813
          %v829 = vunpack.c.l.b16 %v814
          %v830 = vpack.c.b16 %v827, %v826
          %v831 = vpack.c.b16 %v829, %v828
          %834 = vmatprep.subr.bf16.mxu0 0
          %835 = vmatpush1.bf16.msra.mxu0 %v830
          %836 = vmatprep.subr.bf16.mxu0 0
          %837 = vmatpush1.bf16.msra.mxu0 %v831
          %838 = vmatprep.subr.bf16.mxu0 0
          %839 = vmatpush1.bf16.msra.mxu0 0
          %840 = vmatprep.subr.bf16.mxu0 0
          %841 = vmatpush1.bf16.msra.mxu0 0
          %842 = vmatprep.subr.bf16.mxu0 0
          %843 = vmatpush1.bf16.msra.mxu0 0
          %844 = vmatprep.subr.bf16.mxu0 0
          %845 = vmatpush1.bf16.msra.mxu0 0
          %846 = vmatprep.subr.bf16.mxu0 0
          %847 = vmatpush1.bf16.msra.mxu0 0
          %848 = vmatprep.subr.bf16.mxu0 0
          %849 = vmatpush1.bf16.msra.mxu0 0
          %850 = vmatprep.subr.bf16.mxu0 0
          %851 = vmatpush1.bf16.msra.mxu0 0
          %852 = vmatprep.subr.bf16.mxu0 0
          %853 = vmatpush1.bf16.msra.mxu0 0
          %854 = vmatprep.subr.bf16.mxu0 0
          %855 = vmatpush1.bf16.msra.mxu0 0
          %856 = vmatprep.subr.bf16.mxu0 0
          %857 = vmatpush1.bf16.msra.mxu0 0
          %858 = vmatprep.subr.bf16.mxu0 0
          %859 = vmatpush1.bf16.msra.mxu0 0
          %860 = vmatprep.subr.bf16.mxu0 0
          %861 = vmatpush1.bf16.msra.mxu0 0
          %862 = vmatprep.subr.bf16.mxu0 0
          %863 = vmatpush1.bf16.msra.mxu0 0
          %864 = vmatprep.subr.bf16.mxu0 0
          %865 = vmatpush1.bf16.msra.mxu0 0
          %866 = vmatprep.mubr.bf16.mxu0 0
          %867 = vmatmul.mubr.bf16.gmra.mrb[0].mxu0 %v769
          %v868 = vpop.f32.mrb[0].mxu0
          %v869 = vadd.f32 %v820, %v868
          %v870 = vpop.f32.mrb[0].mxu0
          %v871 = vpop.f32.mrb[0].mxu0
          %v872 = vpop.f32.mrb[0].mxu0
          %873 = vdwg.mxu0
          %v874 = vpack.c.bf16 %v806, %v806
          %vm875 = vcmask 257024
          %876 = vst.msk [vmem:[#allocation2] sm:$0xf] %vm875, %v874
          %v877 = vpack.c.bf16 %v869, %v869
          %878 = vst.msk [vmem:[#allocation3] sm:$0xf] %vm875, %v877
        $region124: #{tpu_custom_call.1} parent=95 // pred_fallthru
          _
        %v879 = vld [vmem:[%s732] sm:$0xff]
        %v880 = vpack.c.bf16 %v879, %v879
        %v881 = vld [vmem:[%s3] sm:$0xf]
        %v882 = vld [vmem:[%s3 + $0x4] sm:$0xf]
        %v883 = vld [vmem:[%s3 + $0x8] sm:$0xf]
        %v884 = vld [vmem:[%s3 + $0xc] sm:$0xf]
        %v885 = vld [vmem:[%s4] sm:$0x1]
        %v887 = vlaneseq
        %v888 = vshrl.u32 %v887, 7
        %v889 = vsub.s32 0, %v888
        %v890 = vrot.slane %v885, %v889
        %v896 = vunpack.c.l.b16 %v881
        %v897 = vunpack.c.l.b16 %v882
        %v898 = vunpack.c.l.b16 %v883
        %v899 = vunpack.c.l.b16 %v884
        %v900 = vpack.c.b16 %v897, %v896
        %v901 = vpack.c.b16 %v899, %v898
        %vm904 = vcmask 261120
        %v906 = vsel %vm904, %v880, 0
        %908 = vmatprep.subr.bf16.mxu0 0
        %909 = vmatpush1.bf16.msra.mxu0 %v900
        %910 = vmatprep.subr.bf16.mxu0 0
        %911 = vmatpush1.bf16.msra.mxu0 %v901
        %912 = vmatprep.subr.bf16.mxu0 0
        %913 = vmatpush1.bf16.msra.mxu0 0
        %914 = vmatprep.subr.bf16.mxu0 0
        %915 = vmatpush1.bf16.msra.mxu0 0
        %916 = vmatprep.subr.bf16.mxu0 0
        %917 = vmatpush1.bf16.msra.mxu0 0
        %918 = vmatprep.subr.bf16.mxu0 0
        %919 = vmatpush1.bf16.msra.mxu0 0
        %920 = vmatprep.subr.bf16.mxu0 0
        %921 = vmatpush1.bf16.msra.mxu0 0
        %922 = vmatprep.subr.bf16.mxu0 0
        %923 = vmatpush1.bf16.msra.mxu0 0
        %924 = vmatprep.subr.bf16.mxu0 0
        %925 = vmatpush1.bf16.msra.mxu0 0
        %926 = vmatprep.subr.bf16.mxu0 0
        %927 = vmatpush1.bf16.msra.mxu0 0
        %928 = vmatprep.subr.bf16.mxu0 0
        %929 = vmatpush1.bf16.msra.mxu0 0
        %930 = vmatprep.subr.bf16.mxu0 0
        %931 = vmatpush1.bf16.msra.mxu0 0
        %932 = vmatprep.subr.bf16.mxu0 0
        %933 = vmatpush1.bf16.msra.mxu0 0
        %934 = vmatprep.subr.bf16.mxu0 0
        %935 = vmatpush1.bf16.msra.mxu0 0
        %936 = vmatprep.subr.bf16.mxu0 0
        %937 = vmatpush1.bf16.msra.mxu0 0
        %938 = vmatprep.subr.bf16.mxu0 0
        %939 = vmatpush1.bf16.msra.mxu0 0
        %940 = vmatprep.mubr.bf16.mxu0 0
        %941 = vmatmul.mubr.bf16.gmra.mrb[0].mxu0 %v906
        %v942 = vpop.f32.mrb[0].mxu0
        %v943 = vadd.f32 %v890, %v942
        %v944 = vpop.f32.mrb[0].mxu0
        %v945 = vpop.f32.mrb[0].mxu0
        %v946 = vpop.f32.mrb[0].mxu0
        %947 = vdwg.mxu0
        %v948 = vpack.c.bf16 %v943, %v943
        %v949 = vld [vmem:[#allocation2] sm:$0xf]
        %v950 = vld [vmem:[#allocation3] sm:$0xf]
        %v951 = vld [vmem:[%s641] sm:$0x1]
        %v953 = vlaneseq
        %v954 = vshrl.u32 %v953, 7
        %v955 = vsub.s32 0, %v954
        %v956 = vrot.slane %v951, %v955
        %v958 = vld [vmem:[%s9] sm:$0xf]
        %v959 = vld [vmem:[%s9 + $0x4] sm:$0xf]
        %v960 = vld [vmem:[%s9 + $0x8] sm:$0xf]
        %v961 = vld [vmem:[%s9 + $0xc] sm:$0xf]
        %vm962 = vcmask 64512
        %v964 = vsel %vm962, %v948, 0
        %v967 = vsel %vm962, %v949, 0
        %969 = vmatprep.subr.bf16.mxu0 0
        %970 = vmatpush1.bf16.xpose.msra.mxu0 %v967
        %971 = vmatprep.subr.bf16.mxu0 0
        %972 = vmatpush1.bf16.xpose.msra.mxu0 0
        %973 = vmatprep.subr.bf16.mxu0 0
        %974 = vmatpush1.bf16.xpose.msra.mxu0 0
        %975 = vmatprep.subr.bf16.mxu0 0
        %976 = vmatpush1.bf16.xpose.msra.mxu0 0
        %977 = vmatprep.subr.bf16.mxu0 0
        %978 = vmatpush1.bf16.xpose.msra.mxu0 0
        %979 = vmatprep.subr.bf16.mxu0 0
        %980 = vmatpush1.bf16.xpose.msra.mxu0 0
        %981 = vmatprep.subr.bf16.mxu0 0
        %982 = vmatpush1.bf16.xpose.msra.mxu0 0
        %983 = vmatprep.subr.bf16.mxu0 0
        %984 = vmatpush1.bf16.xpose.msra.mxu0 0
        %985 = vmatprep.subr.bf16.mxu0 0
        %986 = vmatpush1.bf16.xpose.msra.mxu0 0
        %987 = vmatprep.subr.bf16.mxu0 0
        %988 = vmatpush1.bf16.xpose.msra.mxu0 0
        %989 = vmatprep.subr.bf16.mxu0 0
        %990 = vmatpush1.bf16.xpose.msra.mxu0 0
        %991 = vmatprep.subr.bf16.mxu0 0
        %992 = vmatpush1.bf16.xpose.msra.mxu0 0
        %993 = vmatprep.subr.bf16.mxu0 0
        %994 = vmatpush1.bf16.xpose.msra.mxu0 0
        %995 = vmatprep.subr.bf16.mxu0 0
        %996 = vmatpush1.bf16.xpose.msra.mxu0 0
        %997 = vmatprep.subr.bf16.mxu0 0
        %998 = vmatpush1.bf16.xpose.msra.mxu0 0
        %999 = vmatprep.subr.bf16.mxu0 0
        %1000 = vmatpush1.bf16.xpose.msra.mxu0 0
        %1001 = vmatprep.mubr.bf16.mxu0 0
        %1002 = vmatmul.mubr.bf16.gmra.mrb[0].mxu0 %v964
        %v1003 = vpop.f32.mrb[0].mxu0
        %v1004 = vadd.f32 0.0, %v1003
        %v1005 = vpop.f32.mrb[0].mxu0
        %v1006 = vpop.f32.mrb[0].mxu0
        %v1007 = vpop.f32.mrb[0].mxu0
        %1008 = vdwg.mxu0
        %v1009 = vmul.f32 %v1004, 0.35355338
        %v1010 = vadd.f32 %v1009, %v956
        %v1011 = vsel %vm962, %v1010, -inf
        %1012 = vmax.xlane.f32.xlu0 %v1011
        %v1013 = vpop.xlane.xlu0 %1012
        %v1014 = vsub.f32 %v1010, %v1013
        %v1015 = vmul.f32 %v1014, 1.442695
        %v1016 = vpow.pop %v1015
        %v1017 = vsel %vm962, %v1016, 0.0
        %1018 = vadd.xlane.f32.xlu0 %v1017
        %v1019 = vpop.xlane.xlu0 %1018
        %v1020 = vrcp.pop %v1019
        %v1021 = vmul.f32 %v1016, %v1020
        %v1022 = vpack.c.bf16 %v1021, %v1021
        %v1024 = vsel %vm962, %v1022, 0
        %vm1026 = vcmask 1043456
        %v1028 = vsel %vm1026, %v950, 0
        %1030 = vmatprep.subr.bf16.mxu0 0
        %1031 = vmatpush1.bf16.msra.mxu0 %v1028
        %1032 = vmatprep.subr.bf16.mxu0 0
        %1033 = vmatpush1.bf16.msra.mxu0 0
        %1034 = vmatprep.subr.bf16.mxu0 0
        %1035 = vmatpush1.bf16.msra.mxu0 0
        %1036 = vmatprep.subr.bf16.mxu0 0
        %1037 = vmatpush1.bf16.msra.mxu0 0
        %1038 = vmatprep.subr.bf16.mxu0 0
        %1039 = vmatpush1.bf16.msra.mxu0 0
        %1040 = vmatprep.subr.bf16.mxu0 0
        %1041 = vmatpush1.bf16.msra.mxu0 0
        %1042 = vmatprep.subr.bf16.mxu0 0
        %1043 = vmatpush1.bf16.msra.mxu0 0
        %1044 = vmatprep.subr.bf16.mxu0 0
        %1045 = vmatpush1.bf16.msra.mxu0 0
        %1046 = vmatprep.subr.bf16.mxu0 0
        %1047 = vmatpush1.bf16.msra.mxu0 0
        %1048 = vmatprep.subr.bf16.mxu0 0
        %1049 = vmatpush1.bf16.msra.mxu0 0
        %1050 = vmatprep.subr.bf16.mxu0 0
        %1051 = vmatpush1.bf16.msra.mxu0 0
        %1052 = vmatprep.subr.bf16.mxu0 0
        %1053 = vmatpush1.bf16.msra.mxu0 0
        %1054 = vmatprep.subr.bf16.mxu0 0
        %1055 = vmatpush1.bf16.msra.mxu0 0
        %1056 = vmatprep.subr.bf16.mxu0 0
        %1057 = vmatpush1.bf16.msra.mxu0 0
        %1058 = vmatprep.subr.bf16.mxu0 0
        %1059 = vmatpush1.bf16.msra.mxu0 0
        %1060 = vmatprep.subr.bf16.mxu0 0
        %1061 = vmatpush1.bf16.msra.mxu0 0
        %1062 = vmatprep.mubr.bf16.mxu0 0
        %1063 = vmatmul.mubr.bf16.gmra.mrb[0].mxu0 %v1024
        %v1064 = vpop.f32.mrb[0].mxu0
        %v1065 = vadd.f32 0.0, %v1064
        %v1066 = vpop.f32.mrb[0].mxu0
        %v1067 = vpop.f32.mrb[0].mxu0
        %v1068 = vpop.f32.mrb[0].mxu0
        %1069 = vdwg.mxu0
        %v1070 = vpack.c.bf16 %v1065, %v1065
        %1072 = vrot.lane.b32.xlu0 %v948, 120
        %v1073 = vpop.permute.xlu0 %1072
        %v1075 = vunpack.c.l.b16 %v949
        %v1076 = vpack.c.b16 %v1075, %v1075
        %1077 = vrot.lane.b32.xlu0 %v1076, 120
        %v1078 = vpop.permute.xlu0 %1077
        %v1080 = vsel %vm962, %v1073, 0
        %v1083 = vsel %vm962, %v1078, 0
        %1085 = vmatprep.subr.bf16.mxu0 0
        %1086 = vmatpush1.bf16.xpose.msra.mxu0 %v1083
        %1087 = vmatprep.subr.bf16.mxu0 0
        %1088 = vmatpush1.bf16.xpose.msra.mxu0 0
        %1089 = vmatprep.subr.bf16.mxu0 0
        %1090 = vmatpush1.bf16.xpose.msra.mxu0 0
        %1091 = vmatprep.subr.bf16.mxu0 0
        %1092 = vmatpush1.bf16.xpose.msra.mxu0 0
        %1093 = vmatprep.subr.bf16.mxu0 0
        %1094 = vmatpush1.bf16.xpose.msra.mxu0 0
        %1095 = vmatprep.subr.bf16.mxu0 0
        %1096 = vmatpush1.bf16.xpose.msra.mxu0 0
        %1097 = vmatprep.subr.bf16.mxu0 0
        %1098 = vmatpush1.bf16.xpose.msra.mxu0 0
        %1099 = vmatprep.subr.bf16.mxu0 0
        %1100 = vmatpush1.bf16.xpose.msra.mxu0 0
        %1101 = vmatprep.subr.bf16.mxu0 0
        %1102 = vmatpush1.bf16.xpose.msra.mxu0 0
        %1103 = vmatprep.subr.bf16.mxu0 0
        %1104 = vmatpush1.bf16.xpose.msra.mxu0 0
        %1105 = vmatprep.subr.bf16.mxu0 0
        %1106 = vmatpush1.bf16.xpose.msra.mxu0 0
        %1107 = vmatprep.subr.bf16.mxu0 0
        %1108 = vmatpush1.bf16.xpose.msra.mxu0 0
        %1109 = vmatprep.subr.bf16.mxu0 0
        %1110 = vmatpush1.bf16.xpose.msra.mxu0 0
        %1111 = vmatprep.subr.bf16.mxu0 0
        %1112 = vmatpush1.bf16.xpose.msra.mxu0 0
        %1113 = vmatprep.subr.bf16.mxu0 0
        %1114 = vmatpush1.bf16.xpose.msra.mxu0 0
        %1115 = vmatprep.subr.bf16.mxu0 0
        %1116 = vmatpush1.bf16.xpose.msra.mxu0 0
        %1117 = vmatprep.mubr.bf16.mxu0 0
        %1118 = vmatmul.mubr.bf16.gmra.mrb[0].mxu0 %v1080
        %v1119 = vpop.f32.mrb[0].mxu0
        %v1120 = vadd.f32 0.0, %v1119
        %v1121 = vpop.f32.mrb[0].mxu0
        %v1122 = vpop.f32.mrb[0].mxu0
        %v1123 = vpop.f32.mrb[0].mxu0
        %1124 = vdwg.mxu0
        %v1125 = vmul.f32 %v1120, 0.35355338
        %v1126 = vadd.f32 %v1125, %v956
        %v1127 = vsel %vm962, %v1126, -inf
        %1128 = vmax.xlane.f32.xlu0 %v1127
        %v1129 = vpop.xlane.xlu0 %1128
        %v1130 = vsub.f32 %v1126, %v1129
        %v1131 = vmul.f32 %v1130, 1.442695
        %v1132 = vpow.pop %v1131
        %v1133 = vsel %vm962, %v1132, 0.0
        %1134 = vadd.xlane.f32.xlu0 %v1133
        %v1135 = vpop.xlane.xlu0 %1134
        %v1136 = vrcp.pop %v1135
        %v1137 = vmul.f32 %v1132, %v1136
        %v1138 = vpack.c.bf16 %v1137, %v1137
        %v1140 = vunpack.c.l.b16 %v950
        %v1141 = vpack.c.b16 %v1140, %v1140
        %1142 = vrot.lane.b32.xlu0 %v1141, 120
        %v1143 = vpop.permute.xlu0 %1142
        %v1145 = vsel %vm962, %v1138, 0
        %v1148 = vsel %vm1026, %v1143, 0
        %1150 = vmatprep.subr.bf16.mxu0 0
        %1151 = vmatpush1.bf16.msra.mxu0 %v1148
        %1152 = vmatprep.subr.bf16.mxu0 0
        %1153 = vmatpush1.bf16.msra.mxu0 0
        %1154 = vmatprep.subr.bf16.mxu0 0
        %1155 = vmatpush1.bf16.msra.mxu0 0
        %1156 = vmatprep.subr.bf16.mxu0 0
        %1157 = vmatpush1.bf16.msra.mxu0 0
        %1158 = vmatprep.subr.bf16.mxu0 0
        %1159 = vmatpush1.bf16.msra.mxu0 0
        %1160 = vmatprep.subr.bf16.mxu0 0
        %1161 = vmatpush1.bf16.msra.mxu0 0
        %1162 = vmatprep.subr.bf16.mxu0 0
        %1163 = vmatpush1.bf16.msra.mxu0 0
        %1164 = vmatprep.subr.bf16.mxu0 0
        %1165 = vmatpush1.bf16.msra.mxu0 0
        %1166 = vmatprep.subr.bf16.mxu0 0
        %1167 = vmatpush1.bf16.msra.mxu0 0
        %1168 = vmatprep.subr.bf16.mxu0 0
        %1169 = vmatpush1.bf16.msra.mxu0 0
        %1170 = vmatprep.subr.bf16.mxu0 0
        %1171 = vmatpush1.bf16.msra.mxu0 0
        %1172 = vmatprep.subr.bf16.mxu0 0
        %1173 = vmatpush1.bf16.msra.mxu0 0
        %1174 = vmatprep.subr.bf16.mxu0 0
        %1175 = vmatpush1.bf16.msra.mxu0 0
        %1176 = vmatprep.subr.bf16.mxu0 0
        %1177 = vmatpush1.bf16.msra.mxu0 0
        %1178 = vmatprep.subr.bf16.mxu0 0
        %1179 = vmatpush1.bf16.msra.mxu0 0
        %1180 = vmatprep.subr.bf16.mxu0 0
        %1181 = vmatpush1.bf16.msra.mxu0 0
        %1182 = vmatprep.mubr.bf16.mxu0 0
        %1183 = vmatmul.mubr.bf16.gmra.mrb[0].mxu0 %v1145
        %v1184 = vpop.f32.mrb[0].mxu0
        %v1185 = vadd.f32 0.0, %v1184
        %v1186 = vpop.f32.mrb[0].mxu0
        %v1187 = vpop.f32.mrb[0].mxu0
        %v1188 = vpop.f32.mrb[0].mxu0
        %1189 = vdwg.mxu0
        %v1190 = vpack.c.bf16 %v1185, %v1185
        %v1192 = vsel %vm962, %v1190, 0
        %v1195 = vsel %vm1026, %v959, 0
        %1197 = vmatprep.subr.bf16.mxu0 0
        %1198 = vmatpush1.bf16.msra.mxu0 %v1195
        %1199 = vmatprep.subr.bf16.mxu0 0
        %1200 = vmatpush1.bf16.msra.mxu0 0
        %1201 = vmatprep.subr.bf16.mxu0 0
        %1202 = vmatpush1.bf16.msra.mxu0 0
        %1203 = vmatprep.subr.bf16.mxu0 0
        %1204 = vmatpush1.bf16.msra.mxu0 0
        %1205 = vmatprep.subr.bf16.mxu0 0
        %1206 = vmatpush1.bf16.msra.mxu0 0
        %1207 = vmatprep.subr.bf16.mxu0 0
        %1208 = vmatpush1.bf16.msra.mxu0 0
        %1209 = vmatprep.subr.bf16.mxu0 0
        %1210 = vmatpush1.bf16.msra.mxu0 0
        %1211 = vmatprep.subr.bf16.mxu0 0
        %1212 = vmatpush1.bf16.msra.mxu0 0
        %1213 = vmatprep.subr.bf16.mxu0 0
        %1214 = vmatpush1.bf16.msra.mxu0 0
        %1215 = vmatprep.subr.bf16.mxu0 0
        %1216 = vmatpush1.bf16.msra.mxu0 0
        %1217 = vmatprep.subr.bf16.mxu0 0
        %1218 = vmatpush1.bf16.msra.mxu0 0
        %1219 = vmatprep.subr.bf16.mxu0 0
        %1220 = vmatpush1.bf16.msra.mxu0 0
        %1221 = vmatprep.subr.bf16.mxu0 0
        %1222 = vmatpush1.bf16.msra.mxu0 0
        %1223 = vmatprep.subr.bf16.mxu0 0
        %1224 = vmatpush1.bf16.msra.mxu0 0
        %1225 = vmatprep.subr.bf16.mxu0 0
        %1226 = vmatpush1.bf16.msra.mxu0 0
        %1227 = vmatprep.subr.bf16.mxu0 0
        %1228 = vmatpush1.bf16.msra.mxu0 0
        %1229 = vmatprep.mubr.bf16.mxu0 0
        %1230 = vmatmul.mubr.bf16.gmra.mrb[0].mxu0 %v1192
        %v1231 = vpop.f32.mrb[0].mxu0
        %v1232 = vadd.f32 0.0, %v1231
        %v1233 = vpop.f32.mrb[0].mxu0
        %v1234 = vpop.f32.mrb[0].mxu0
        %v1235 = vpop.f32.mrb[0].mxu0
        %1236 = vdwg.mxu0
        %v1238 = vsel %vm962, %v1070, 0
        %v1241 = vsel %vm1026, %v958, 0
        %1243 = vmatprep.subr.bf16.mxu0 0
        %1244 = vmatpush1.bf16.msra.mxu0 %v1241
        %1245 = vmatprep.subr.bf16.mxu0 0
        %1246 = vmatpush1.bf16.msra.mxu0 0
        %1247 = vmatprep.subr.bf16.mxu0 0
        %1248 = vmatpush1.bf16.msra.mxu0 0
        %1249 = vmatprep.subr.bf16.mxu0 0
        %1250 = vmatpush1.bf16.msra.mxu0 0
        %1251 = vmatprep.subr.bf16.mxu0 0
        %1252 = vmatpush1.bf16.msra.mxu0 0
        %1253 = vmatprep.subr.bf16.mxu0 0
        %1254 = vmatpush1.bf16.msra.mxu0 0
        %1255 = vmatprep.subr.bf16.mxu0 0
        %1256 = vmatpush1.bf16.msra.mxu0 0
        %1257 = vmatprep.subr.bf16.mxu0 0
        %1258 = vmatpush1.bf16.msra.mxu0 0
        %1259 = vmatprep.subr.bf16.mxu0 0
        %1260 = vmatpush1.bf16.msra.mxu0 0
        %1261 = vmatprep.subr.bf16.mxu0 0
        %1262 = vmatpush1.bf16.msra.mxu0 0
        %1263 = vmatprep.subr.bf16.mxu0 0
        %1264 = vmatpush1.bf16.msra.mxu0 0
        %1265 = vmatprep.subr.bf16.mxu0 0
        %1266 = vmatpush1.bf16.msra.mxu0 0
        %1267 = vmatprep.subr.bf16.mxu0 0
        %1268 = vmatpush1.bf16.msra.mxu0 0
        %1269 = vmatprep.subr.bf16.mxu0 0
        %1270 = vmatpush1.bf16.msra.mxu0 0
        %1271 = vmatprep.subr.bf16.mxu0 0
        %1272 = vmatpush1.bf16.msra.mxu0 0
        %1273 = vmatprep.subr.bf16.mxu0 0
        %1274 = vmatpush1.bf16.msra.mxu0 0
        %1275 = vmatprep.mubr.bf16.mxu0 0
        %1276 = vmatmul.mubr.bf16.gmra.mrb[0].mxu0 %v1238
        %v1277 = vpop.f32.mrb[0].mxu0
        %v1278 = vadd.f32 %v1232, %v1277
        %v1279 = vpop.f32.mrb[0].mxu0
        %v1280 = vpop.f32.mrb[0].mxu0
        %v1281 = vpop.f32.mrb[0].mxu0
        %1282 = vdwg.mxu0
        %1283 = vrot.lane.b32.xlu0 %v948, 112
        %v1284 = vpop.permute.xlu0 %1283
        %1285 = vrot.lane.b32.xlu0 %v1076, 112
        %v1286 = vpop.permute.xlu0 %1285
        %v1288 = vsel %vm962, %v1284, 0
        %v1291 = vsel %vm962, %v1286, 0
        %1293 = vmatprep.subr.bf16.mxu0 0
        %1294 = vmatpush1.bf16.xpose.msra.mxu0 %v1291
        %1295 = vmatprep.subr.bf16.mxu0 0
        %1296 = vmatpush1.bf16.xpose.msra.mxu0 0
        %1297 = vmatprep.subr.bf16.mxu0 0
        %1298 = vmatpush1.bf16.xpose.msra.mxu0 0
        %1299 = vmatprep.subr.bf16.mxu0 0
        %1300 = vmatpush1.bf16.xpose.msra.mxu0 0
        %1301 = vmatprep.subr.bf16.mxu0 0
        %1302 = vmatpush1.bf16.xpose.msra.mxu0 0
        %1303 = vmatprep.subr.bf16.mxu0 0
        %1304 = vmatpush1.bf16.xpose.msra.mxu0 0
        %1305 = vmatprep.subr.bf16.mxu0 0
        %1306 = vmatpush1.bf16.xpose.msra.mxu0 0
        %1307 = vmatprep.subr.bf16.mxu0 0
        %1308 = vmatpush1.bf16.xpose.msra.mxu0 0
        %1309 = vmatprep.subr.bf16.mxu0 0
        %1310 = vmatpush1.bf16.xpose.msra.mxu0 0
        %1311 = vmatprep.subr.bf16.mxu0 0
        %1312 = vmatpush1.bf16.xpose.msra.mxu0 0
        %1313 = vmatprep.subr.bf16.mxu0 0
        %1314 = vmatpush1.bf16.xpose.msra.mxu0 0
        %1315 = vmatprep.subr.bf16.mxu0 0
        %1316 = vmatpush1.bf16.xpose.msra.mxu0 0
        %1317 = vmatprep.subr.bf16.mxu0 0
        %1318 = vmatpush1.bf16.xpose.msra.mxu0 0
        %1319 = vmatprep.subr.bf16.mxu0 0
        %1320 = vmatpush1.bf16.xpose.msra.mxu0 0
        %1321 = vmatprep.subr.bf16.mxu0 0
        %1322 = vmatpush1.bf16.xpose.msra.mxu0 0
        %1323 = vmatprep.subr.bf16.mxu0 0
        %1324 = vmatpush1.bf16.xpose.msra.mxu0 0
        %1325 = vmatprep.mubr.bf16.mxu0 0
        %1326 = vmatmul.mubr.bf16.gmra.mrb[0].mxu0 %v1288
        %v1327 = vpop.f32.mrb[0].mxu0
        %v1328 = vadd.f32 0.0, %v1327
        %v1329 = vpop.f32.mrb[0].mxu0
        %v1330 = vpop.f32.mrb[0].mxu0
        %v1331 = vpop.f32.mrb[0].mxu0
        %1332 = vdwg.mxu0
        %v1333 = vmul.f32 %v1328, 0.35355338
        %v1334 = vadd.f32 %v1333, %v956
        %v1335 = vsel %vm962, %v1334, -inf
        %1336 = vmax.xlane.f32.xlu0 %v1335
        %v1337 = vpop.xlane.xlu0 %1336
        %v1338 = vsub.f32 %v1334, %v1337
        %v1339 = vmul.f32 %v1338, 1.442695
        %v1340 = vpow.pop %v1339
        %v1341 = vsel %vm962, %v1340, 0.0
        %1342 = vadd.xlane.f32.xlu0 %v1341
        %v1343 = vpop.xlane.xlu0 %1342
        %v1344 = vrcp.pop %v1343
        %v1345 = vmul.f32 %v1340, %v1344
        %v1346 = vpack.c.bf16 %v1345, %v1345
        %1347 = vrot.lane.b32.xlu0 %v1141, 112
        %v1348 = vpop.permute.xlu0 %1347
        %v1350 = vsel %vm962, %v1346, 0
        %v1353 = vsel %vm1026, %v1348, 0
        %1355 = vmatprep.subr.bf16.mxu0 0
        %1356 = vmatpush1.bf16.msra.mxu0 %v1353
        %1357 = vmatprep.subr.bf16.mxu0 0
        %1358 = vmatpush1.bf16.msra.mxu0 0
        %1359 = vmatprep.subr.bf16.mxu0 0
        %1360 = vmatpush1.bf16.msra.mxu0 0
        %1361 = vmatprep.subr.bf16.mxu0 0
        %1362 = vmatpush1.bf16.msra.mxu0 0
        %1363 = vmatprep.subr.bf16.mxu0 0
        %1364 = vmatpush1.bf16.msra.mxu0 0
        %1365 = vmatprep.subr.bf16.mxu0 0
        %1366 = vmatpush1.bf16.msra.mxu0 0
        %1367 = vmatprep.subr.bf16.mxu0 0
        %1368 = vmatpush1.bf16.msra.mxu0 0
        %1369 = vmatprep.subr.bf16.mxu0 0
        %1370 = vmatpush1.bf16.msra.mxu0 0
        %1371 = vmatprep.subr.bf16.mxu0 0
        %1372 = vmatpush1.bf16.msra.mxu0 0
        %1373 = vmatprep.subr.bf16.mxu0 0
        %1374 = vmatpush1.bf16.msra.mxu0 0
        %1375 = vmatprep.subr.bf16.mxu0 0
        %1376 = vmatpush1.bf16.msra.mxu0 0
        %1377 = vmatprep.subr.bf16.mxu0 0
        %1378 = vmatpush1.bf16.msra.mxu0 0
        %1379 = vmatprep.subr.bf16.mxu0 0
        %1380 = vmatpush1.bf16.msra.mxu0 0
        %1381 = vmatprep.subr.bf16.mxu0 0
        %1382 = vmatpush1.bf16.msra.mxu0 0
        %1383 = vmatprep.subr.bf16.mxu0 0
        %1384 = vmatpush1.bf16.msra.mxu0 0
        %1385 = vmatprep.subr.bf16.mxu0 0
        %1386 = vmatpush1.bf16.msra.mxu0 0
        %1387 = vmatprep.mubr.bf16.mxu0 0
        %1388 = vmatmul.mubr.bf16.gmra.mrb[0].mxu0 %v1350
        %v1389 = vpop.f32.mrb[0].mxu0
        %v1390 = vadd.f32 0.0, %v1389
        %v1391 = vpop.f32.mrb[0].mxu0
        %v1392 = vpop.f32.mrb[0].mxu0
        %v1393 = vpop.f32.mrb[0].mxu0
        %1394 = vdwg.mxu0
        %v1395 = vpack.c.bf16 %v1390, %v1390
        %v1397 = vsel %vm962, %v1395, 0
        %v1400 = vsel %vm1026, %v960, 0
        %1402 = vmatprep.subr.bf16.mxu0 0
        %1403 = vmatpush1.bf16.msra.mxu0 %v1400
        %1404 = vmatprep.subr.bf16.mxu0 0
        %1405 = vmatpush1.bf16.msra.mxu0 0
        %1406 = vmatprep.subr.bf16.mxu0 0
        %1407 = vmatpush1.bf16.msra.mxu0 0
        %1408 = vmatprep.subr.bf16.mxu0 0
        %1409 = vmatpush1.bf16.msra.mxu0 0
        %1410 = vmatprep.subr.bf16.mxu0 0
        %1411 = vmatpush1.bf16.msra.mxu0 0
        %1412 = vmatprep.subr.bf16.mxu0 0
        %1413 = vmatpush1.bf16.msra.mxu0 0
        %1414 = vmatprep.subr.bf16.mxu0 0
        %1415 = vmatpush1.bf16.msra.mxu0 0
        %1416 = vmatprep.subr.bf16.mxu0 0
        %1417 = vmatpush1.bf16.msra.mxu0 0
        %1418 = vmatprep.subr.bf16.mxu0 0
        %1419 = vmatpush1.bf16.msra.mxu0 0
        %1420 = vmatprep.subr.bf16.mxu0 0
        %1421 = vmatpush1.bf16.msra.mxu0 0
        %1422 = vmatprep.subr.bf16.mxu0 0
        %1423 = vmatpush1.bf16.msra.mxu0 0
        %1424 = vmatprep.subr.bf16.mxu0 0
        %1425 = vmatpush1.bf16.msra.mxu0 0
        %1426 = vmatprep.subr.bf16.mxu0 0
        %1427 = vmatpush1.bf16.msra.mxu0 0
        %1428 = vmatprep.subr.bf16.mxu0 0
        %1429 = vmatpush1.bf16.msra.mxu0 0
        %1430 = vmatprep.subr.bf16.mxu0 0
        %1431 = vmatpush1.bf16.msra.mxu0 0
        %1432 = vmatprep.subr.bf16.mxu0 0
        %1433 = vmatpush1.bf16.msra.mxu0 0
        %1434 = vmatprep.mubr.bf16.mxu0 0
        %1435 = vmatmul.mubr.bf16.gmra.mrb[0].mxu0 %v1397
        %v1436 = vpop.f32.mrb[0].mxu0
        %v1437 = vadd.f32 0.0, %v1436
        %v1438 = vpop.f32.mrb[0].mxu0
        %v1439 = vpop.f32.mrb[0].mxu0
        %v1440 = vpop.f32.mrb[0].mxu0
        %1441 = vdwg.mxu0
        %v1442 = vadd.f32 %v1278, %v1437
        %1443 = vrot.lane.b32.xlu0 %v948, 104
        %v1444 = vpop.permute.xlu0 %1443
        %1445 = vrot.lane.b32.xlu0 %v1076, 104
        %v1446 = vpop.permute.xlu0 %1445
        %v1448 = vsel %vm962, %v1444, 0
        %v1451 = vsel %vm962, %v1446, 0
        %1453 = vmatprep.subr.bf16.mxu0 0
        %1454 = vmatpush1.bf16.xpose.msra.mxu0 %v1451
        %1455 = vmatprep.subr.bf16.mxu0 0
        %1456 = vmatpush1.bf16.xpose.msra.mxu0 0
        %1457 = vmatprep.subr.bf16.mxu0 0
        %1458 = vmatpush1.bf16.xpose.msra.mxu0 0
        %1459 = vmatprep.subr.bf16.mxu0 0
        %1460 = vmatpush1.bf16.xpose.msra.mxu0 0
        %1461 = vmatprep.subr.bf16.mxu0 0
        %1462 = vmatpush1.bf16.xpose.msra.mxu0 0
        %1463 = vmatprep.subr.bf16.mxu0 0
        %1464 = vmatpush1.bf16.xpose.msra.mxu0 0
        %1465 = vmatprep.subr.bf16.mxu0 0
        %1466 = vmatpush1.bf16.xpose.msra.mxu0 0
        %1467 = vmatprep.subr.bf16.mxu0 0
        %1468 = vmatpush1.bf16.xpose.msra.mxu0 0
        %1469 = vmatprep.subr.bf16.mxu0 0
        %1470 = vmatpush1.bf16.xpose.msra.mxu0 0
        %1471 = vmatprep.subr.bf16.mxu0 0
        %1472 = vmatpush1.bf16.xpose.msra.mxu0 0
        %1473 = vmatprep.subr.bf16.mxu0 0
        %1474 = vmatpush1.bf16.xpose.msra.mxu0 0
        %1475 = vmatprep.subr.bf16.mxu0 0
        %1476 = vmatpush1.bf16.xpose.msra.mxu0 0
        %1477 = vmatprep.subr.bf16.mxu0 0
        %1478 = vmatpush1.bf16.xpose.msra.mxu0 0
        %1479 = vmatprep.subr.bf16.mxu0 0
        %1480 = vmatpush1.bf16.xpose.msra.mxu0 0
        %1481 = vmatprep.subr.bf16.mxu0 0
        %1482 = vmatpush1.bf16.xpose.msra.mxu0 0
        %1483 = vmatprep.subr.bf16.mxu0 0
        %1484 = vmatpush1.bf16.xpose.msra.mxu0 0
        %1485 = vmatprep.mubr.bf16.mxu0 0
        %1486 = vmatmul.mubr.bf16.gmra.mrb[0].mxu0 %v1448
        %v1487 = vpop.f32.mrb[0].mxu0
        %v1488 = vadd.f32 0.0, %v1487
        %v1489 = vpop.f32.mrb[0].mxu0
        %v1490 = vpop.f32.mrb[0].mxu0
        %v1491 = vpop.f32.mrb[0].mxu0
        %1492 = vdwg.mxu0
        %v1493 = vmul.f32 %v1488, 0.35355338
        %v1494 = vadd.f32 %v1493, %v956
        %v1495 = vsel %vm962, %v1494, -inf
        %1496 = vmax.xlane.f32.xlu0 %v1495
        %v1497 = vpop.xlane.xlu0 %1496
        %v1498 = vsub.f32 %v1494, %v1497
        %v1499 = vmul.f32 %v1498, 1.442695
        %v1500 = vpow.pop %v1499
        %v1501 = vsel %vm962, %v1500, 0.0
        %1502 = vadd.xlane.f32.xlu0 %v1501
        %v1503 = vpop.xlane.xlu0 %1502
        %v1504 = vrcp.pop %v1503
        %v1505 = vmul.f32 %v1500, %v1504
        %v1506 = vpack.c.bf16 %v1505, %v1505
        %1507 = vrot.lane.b32.xlu0 %v1141, 104
        %v1508 = vpop.permute.xlu0 %1507
        %v1510 = vsel %vm962, %v1506, 0
        %v1513 = vsel %vm1026, %v1508, 0
        %1515 = vmatprep.subr.bf16.mxu0 0
        %1516 = vmatpush1.bf16.msra.mxu0 %v1513
        %1517 = vmatprep.subr.bf16.mxu0 0
        %1518 = vmatpush1.bf16.msra.mxu0 0
        %1519 = vmatprep.subr.bf16.mxu0 0
        %1520 = vmatpush1.bf16.msra.mxu0 0
        %1521 = vmatprep.subr.bf16.mxu0 0
        %1522 = vmatpush1.bf16.msra.mxu0 0
        %1523 = vmatprep.subr.bf16.mxu0 0
        %1524 = vmatpush1.bf16.msra.mxu0 0
        %1525 = vmatprep.subr.bf16.mxu0 0
        %1526 = vmatpush1.bf16.msra.mxu0 0
        %1527 = vmatprep.subr.bf16.mxu0 0
        %1528 = vmatpush1.bf16.msra.mxu0 0
        %1529 = vmatprep.subr.bf16.mxu0 0
        %1530 = vmatpush1.bf16.msra.mxu0 0
        %1531 = vmatprep.subr.bf16.mxu0 0
        %1532 = vmatpush1.bf16.msra.mxu0 0
        %1533 = vmatprep.subr.bf16.mxu0 0
        %1534 = vmatpush1.bf16.msra.mxu0 0
        %1535 = vmatprep.subr.bf16.mxu0 0
        %1536 = vmatpush1.bf16.msra.mxu0 0
        %1537 = vmatprep.subr.bf16.mxu0 0
        %1538 = vmatpush1.bf16.msra.mxu0 0
        %1539 = vmatprep.subr.bf16.mxu0 0
        %1540 = vmatpush1.bf16.msra.mxu0 0
        %1541 = vmatprep.subr.bf16.mxu0 0
        %1542 = vmatpush1.bf16.msra.mxu0 0
        %1543 = vmatprep.subr.bf16.mxu0 0
        %1544 = vmatpush1.bf16.msra.mxu0 0
        %1545 = vmatprep.subr.bf16.mxu0 0
        %1546 = vmatpush1.bf16.msra.mxu0 0
        %1547 = vmatprep.mubr.bf16.mxu0 0
        %1548 = vmatmul.mubr.bf16.gmra.mrb[0].mxu0 %v1510
        %v1549 = vpop.f32.mrb[0].mxu0
        %v1550 = vadd.f32 0.0, %v1549
        %v1551 = vpop.f32.mrb[0].mxu0
        %v1552 = vpop.f32.mrb[0].mxu0
        %v1553 = vpop.f32.mrb[0].mxu0
        %1554 = vdwg.mxu0
        %v1555 = vpack.c.bf16 %v1550, %v1550
        %v1557 = vsel %vm962, %v1555, 0
        %v1560 = vsel %vm1026, %v961, 0
        %1562 = vmatprep.subr.bf16.mxu0 0
        %1563 = vmatpush1.bf16.msra.mxu0 %v1560
        %1564 = vmatprep.subr.bf16.mxu0 0
        %1565 = vmatpush1.bf16.msra.mxu0 0
        %1566 = vmatprep.subr.bf16.mxu0 0
        %1567 = vmatpush1.bf16.msra.mxu0 0
        %1568 = vmatprep.subr.bf16.mxu0 0
        %1569 = vmatpush1.bf16.msra.mxu0 0
        %1570 = vmatprep.subr.bf16.mxu0 0
        %1571 = vmatpush1.bf16.msra.mxu0 0
        %1572 = vmatprep.subr.bf16.mxu0 0
        %1573 = vmatpush1.bf16.msra.mxu0 0
        %1574 = vmatprep.subr.bf16.mxu0 0
        %1575 = vmatpush1.bf16.msra.mxu0 0
        %1576 = vmatprep.subr.bf16.mxu0 0
        %1577 = vmatpush1.bf16.msra.mxu0 0
        %1578 = vmatprep.subr.bf16.mxu0 0
        %1579 = vmatpush1.bf16.msra.mxu0 0
        %1580 = vmatprep.subr.bf16.mxu0 0
        %1581 = vmatpush1.bf16.msra.mxu0 0
        %1582 = vmatprep.subr.bf16.mxu0 0
        %1583 = vmatpush1.bf16.msra.mxu0 0
        %1584 = vmatprep.subr.bf16.mxu0 0
        %1585 = vmatpush1.bf16.msra.mxu0 0
        %1586 = vmatprep.subr.bf16.mxu0 0
        %1587 = vmatpush1.bf16.msra.mxu0 0
        %1588 = vmatprep.subr.bf16.mxu0 0
        %1589 = vmatpush1.bf16.msra.mxu0 0
        %1590 = vmatprep.subr.bf16.mxu0 0
        %1591 = vmatpush1.bf16.msra.mxu0 0
        %1592 = vmatprep.subr.bf16.mxu0 0
        %1593 = vmatpush1.bf16.msra.mxu0 0
        %1594 = vmatprep.mubr.bf16.mxu0 0
        %1595 = vmatmul.mubr.bf16.gmra.mrb[0].mxu0 %v1557
        %v1596 = vpop.f32.mrb[0].mxu0
        %v1597 = vadd.f32 0.0, %v1596
        %v1598 = vpop.f32.mrb[0].mxu0
        %v1599 = vpop.f32.mrb[0].mxu0
        %v1600 = vpop.f32.mrb[0].mxu0
        %1601 = vdwg.mxu0
        %v1602 = vadd.f32 %v1442, %v1597
        %v1603 = vld [vmem:[#allocation10] sm:$0x1]
        %v1605 = vlaneseq
        %v1606 = vshrl.u32 %v1605, 7
        %v1607 = vsub.s32 0, %v1606
        %v1608 = vrot.slane %v1603, %v1607
        %v1610 = vadd.f32 %v1602, %v1608
        %v1611 = vadd.f32 %v1610, %v879
        %v1612 = vld [vmem:[#allocation12] sm:$0x1]
        %v1613 = vld [vmem:[#allocation13] sm:$0x1]
        %v1614 = vsel %vm904, %v1611, 0.0
        %1615 = vadd.xlane.f32.xlu0 %v1614
        %v1616 = vpop.xlane.xlu0 %1615
        %v1617 = vrcp.pop 32.0
        %v1618 = vmul.f32 %v1616, %v1617
        %v1619 = vsub.f32 %v1611, %v1618
        %v1620 = vmul.f32 %v1619, %v1619
        %v1621 = vsel %vm904, %v1620, 0.0
        %1622 = vadd.xlane.f32.xlu0 %v1621
        %v1623 = vpop.xlane.xlu0 %1622
        %v1624 = vmul.f32 %v1623, %v1617
        %v1625 = vadd.f32 %v1624, 1e-12
        %v1626 = vrsqrt.pop %v1625
        %v1627 = vmul.f32 %v1619, %v1626
        %v1629 = vlaneseq
        %v1630 = vshrl.u32 %v1629, 7
        %v1631 = vsub.s32 0, %v1630
        %v1632 = vrot.slane %v1612, %v1631
        %v1634 = vmul.f32 %v1632, %v1627
        %v1636 = vlaneseq
        %v1637 = vshrl.u32 %v1636, 7
        %v1638 = vsub.s32 0, %v1637
        %v1639 = vrot.slane %v1613, %v1638
        %v1641 = vadd.f32 %v1634, %v1639
        %v1642 = vpack.c.bf16 %v1641, %v1641
        %v1643 = vld [vmem:[%s13] sm:$0xf]
        %v1644 = vld [vmem:[%s13 + $0x4] sm:$0xf]
        %v1645 = vld [vmem:[%s13 + $0x8] sm:$0xf]
        %v1646 = vld [vmem:[%s13 + $0xc] sm:$0xf]
        %v1647 = vld [vmem:[%s14] sm:$0x1]
        %v1649 = vlaneseq
        %v1650 = vshrl.u32 %v1649, 7
        %v1651 = vsub.s32 0, %v1650
        %v1652 = vrot.slane %v1647, %v1651
        %v1658 = vunpack.c.l.b16 %v1643
        %v1659 = vunpack.c.l.b16 %v1644
        %v1660 = vunpack.c.l.b16 %v1645
        %v1661 = vunpack.c.l.b16 %v1646
        %v1662 = vpack.c.b16 %v1659, %v1658
        %v1663 = vpack.c.b16 %v1661, %v1660
        %v1667 = vsel %vm904, %v1642, 0
        %1669 = vmatprep.subr.bf16.mxu0 0
        %1670 = vmatpush1.bf16.msra.mxu0 %v1662
        %1671 = vmatprep.subr.bf16.mxu0 0
        %1672 = vmatpush1.bf16.msra.mxu0 %v1663
        %1673 = vmatprep.subr.bf16.mxu0 0
        %1674 = vmatpush1.bf16.msra.mxu0 0
        %1675 = vmatprep.subr.bf16.mxu0 0
        %1676 = vmatpush1.bf16.msra.mxu0 0
        %1677 = vmatprep.subr.bf16.mxu0 0
        %1678 = vmatpush1.bf16.msra.mxu0 0
        %1679 = vmatprep.subr.bf16.mxu0 0
        %1680 = vmatpush1.bf16.msra.mxu0 0
        %1681 = vmatprep.subr.bf16.mxu0 0
        %1682 = vmatpush1.bf16.msra.mxu0 0
        %1683 = vmatprep.subr.bf16.mxu0 0
        %1684 = vmatpush1.bf16.msra.mxu0 0
        %1685 = vmatprep.subr.bf16.mxu0 0
        %1686 = vmatpush1.bf16.msra.mxu0 0
        %1687 = vmatprep.subr.bf16.mxu0 0
        %1688 = vmatpush1.bf16.msra.mxu0 0
        %1689 = vmatprep.subr.bf16.mxu0 0
        %1690 = vmatpush1.bf16.msra.mxu0 0
        %1691 = vmatprep.subr.bf16.mxu0 0
        %1692 = vmatpush1.bf16.msra.mxu0 0
        %1693 = vmatprep.subr.bf16.mxu0 0
        %1694 = vmatpush1.bf16.msra.mxu0 0
        %1695 = vmatprep.subr.bf16.mxu0 0
        %1696 = vmatpush1.bf16.msra.mxu0 0
        %1697 = vmatprep.subr.bf16.mxu0 0
        %1698 = vmatpush1.bf16.msra.mxu0 0
        %1699 = vmatprep.subr.bf16.mxu0 0
        %1700 = vmatpush1.bf16.msra.mxu0 0
        %1701 = vmatprep.mubr.bf16.mxu0 0
        %1702 = vmatmul.mubr.bf16.gmra.mrb[0].mxu0 %v1667
        %v1703 = vpop.f32.mrb[0].mxu0
        %v1704 = vadd.f32 %v1652, %v1703
        %v1705 = vpop.f32.mrb[0].mxu0
        %v1706 = vpop.f32.mrb[0].mxu0
        %v1707 = vpop.f32.mrb[0].mxu0
        %1708 = vdwg.mxu0
        %v1709 = vmul.f32 %v1704, 0.5
        %v1710 = vmul.f32 %v1704, 0.70710677
        %v1711 = verf.f32.pop %v1710
        %v1712 = vadd.f32 %v1711, 1.0
        %v1713 = vmul.f32 %v1709, %v1712
        %v1714 = vpack.c.bf16 %v1713, %v1713
        %v1715 = vld [vmem:[%s15] sm:$0xf]
        %v1716 = vld [vmem:[%s15 + $0x4] sm:$0xf]
        %v1717 = vld [vmem:[%s15 + $0x8] sm:$0xf]
        %v1718 = vld [vmem:[%s15 + $0xc] sm:$0xf]
        %v1719 = vld [vmem:[%s15 + $0x10] sm:$0xf]
        %v1720 = vld [vmem:[%s15 + $0x14] sm:$0xf]
        %v1721 = vld [vmem:[%s15 + $0x18] sm:$0xf]
        %v1722 = vld [vmem:[%s15 + $0x1c] sm:$0xf]
        %v1723 = vld [vmem:[%s15 + $0x20] sm:$0xf]
        %v1724 = vld [vmem:[%s15 + $0x24] sm:$0xf]
        %v1725 = vld [vmem:[%s15 + $0x28] sm:$0xf]
        %v1726 = vld [vmem:[%s15 + $0x2c] sm:$0xf]
        %v1727 = vld [vmem:[%s15 + $0x30] sm:$0xf]
        %v1728 = vld [vmem:[%s15 + $0x34] sm:$0xf]
        %v1729 = vld [vmem:[%s15 + $0x38] sm:$0xf]
        %v1730 = vld [vmem:[%s15 + $0x3c] sm:$0xf]
        %v1731 = vld [vmem:[%s16] sm:$0x1]
        %v1733 = vlaneseq
        %v1734 = vshrl.u32 %v1733, 7
        %v1735 = vsub.s32 0, %v1734
        %v1736 = vrot.slane %v1731, %v1735
        %v1754 = vunpack.c.l.b16 %v1715
        %v1755 = vunpack.c.l.b16 %v1716
        %v1756 = vunpack.c.l.b16 %v1717
        %v1757 = vunpack.c.l.b16 %v1718
        %v1758 = vunpack.c.l.b16 %v1719
        %v1759 = vunpack.c.l.b16 %v1720
        %v1760 = vunpack.c.l.b16 %v1721
        %v1761 = vunpack.c.l.b16 %v1722
        %v1762 = vunpack.c.l.b16 %v1723
        %v1763 = vunpack.c.l.b16 %v1724
        %v1764 = vunpack.c.l.b16 %v1725
        %v1765 = vunpack.c.l.b16 %v1726
        %v1766 = vunpack.c.l.b16 %v1727
        %v1767 = vunpack.c.l.b16 %v1728
        %v1768 = vunpack.c.l.b16 %v1729
        %v1769 = vunpack.c.l.b16 %v1730
        %v1770 = vpack.c.b16 %v1755, %v1754
        %v1771 = vpack.c.b16 %v1757, %v1756
        %v1772 = vpack.c.b16 %v1759, %v1758
        %v1773 = vpack.c.b16 %v1761, %v1760
        %v1774 = vpack.c.b16 %v1763, %v1762
        %v1775 = vpack.c.b16 %v1765, %v1764
        %v1776 = vpack.c.b16 %v1767, %v1766
        %v1777 = vpack.c.b16 %v1769, %v1768
        %1786 = vmatprep.subr.bf16.mxu0 0
        %1787 = vmatpush1.bf16.msra.mxu0 %v1770
        %1788 = vmatprep.subr.bf16.mxu0 0
        %1789 = vmatpush1.bf16.msra.mxu0 %v1771
        %1790 = vmatprep.subr.bf16.mxu0 0
        %1791 = vmatpush1.bf16.msra.mxu0 %v1772
        %1792 = vmatprep.subr.bf16.mxu0 0
        %1793 = vmatpush1.bf16.msra.mxu0 %v1773
        %1794 = vmatprep.subr.bf16.mxu0 0
        %1795 = vmatpush1.bf16.msra.mxu0 %v1774
        %1796 = vmatprep.subr.bf16.mxu0 0
        %1797 = vmatpush1.bf16.msra.mxu0 %v1775
        %1798 = vmatprep.subr.bf16.mxu0 0
        %1799 = vmatpush1.bf16.msra.mxu0 %v1776
        %1800 = vmatprep.subr.bf16.mxu0 0
        %1801 = vmatpush1.bf16.msra.mxu0 %v1777
        %1802 = vmatprep.subr.bf16.mxu0 0
        %1803 = vmatpush1.bf16.msra.mxu0 0
        %1804 = vmatprep.subr.bf16.mxu0 0
        %1805 = vmatpush1.bf16.msra.mxu0 0
        %1806 = vmatprep.subr.bf16.mxu0 0
        %1807 = vmatpush1.bf16.msra.mxu0 0
        %1808 = vmatprep.subr.bf16.mxu0 0
        %1809 = vmatpush1.bf16.msra.mxu0 0
        %1810 = vmatprep.subr.bf16.mxu0 0
        %1811 = vmatpush1.bf16.msra.mxu0 0
        %1812 = vmatprep.subr.bf16.mxu0 0
        %1813 = vmatpush1.bf16.msra.mxu0 0
        %1814 = vmatprep.subr.bf16.mxu0 0
        %1815 = vmatpush1.bf16.msra.mxu0 0
        %1816 = vmatprep.subr.bf16.mxu0 0
        %1817 = vmatpush1.bf16.msra.mxu0 0
        %1818 = vmatprep.mubr.bf16.mxu0 0
        %1819 = vmatmul.mubr.bf16.gmra.mrb[0].mxu0 %v1714
        %v1820 = vpop.f32.mrb[0].mxu0
        %v1821 = vadd.f32 %v1736, %v1820
        %v1822 = vpop.f32.mrb[0].mxu0
        %v1823 = vpop.f32.mrb[0].mxu0
        %v1824 = vpop.f32.mrb[0].mxu0
        %1825 = vdwg.mxu0
        %v1826 = vadd.f32 %v1821, %v1641
        %v1827 = vld [vmem:[%s17] sm:$0x1]
        %v1828 = vld [vmem:[%s18] sm:$0x1]
        %v1829 = vsel %vm904, %v1826, 0.0
        %1830 = vadd.xlane.f32.xlu0 %v1829
        %v1831 = vpop.xlane.xlu0 %1830
        %v1832 = vmul.f32 %v1831, %v1617
        %v1833 = vsub.f32 %v1826, %v1832
        %v1834 = vmul.f32 %v1833, %v1833
        %v1835 = vsel %vm904, %v1834, 0.0
        %1836 = vadd.xlane.f32.xlu0 %v1835
        %v1837 = vpop.xlane.xlu0 %1836
        %v1838 = vmul.f32 %v1837, %v1617
        %v1839 = vadd.f32 %v1838, 1e-12
        %v1840 = vrsqrt.pop %v1839
        %v1841 = vmul.f32 %v1833, %v1840
        %v1843 = vlaneseq
        %v1844 = vshrl.u32 %v1843, 7
        %v1845 = vsub.s32 0, %v1844
        %v1846 = vrot.slane %v1827, %v1845
        %v1848 = vmul.f32 %v1846, %v1841
        %v1850 = vlaneseq
        %v1851 = vshrl.u32 %v1850, 7
        %v1852 = vsub.s32 0, %v1851
        %v1853 = vrot.slane %v1828, %v1852
        %v1855 = vadd.f32 %v1848, %v1853
        %1856 = vst.msk [vmem:[%s725] sm:$0xff] %vm904, %v1855
        %s1857 = sand.u32 %s477, 1
        %s1858 = scalar_lea.sflag [#allocation6], %s1857
        %s1859 = sand.u32 %s477, 1
        %s1860 = smul.addr %s1859, 8
        %s1861 = scalar_lea.vmem [#allocation15], %s1860
        // Predicated region
        $region125: #{tpu_custom_call.1} parent=95 // pred_check
          %p1862 = pneg %p487
        $region126: #{tpu_custom_call.1} parent=95 // pred_check_branch
          %1864 = sbr.rel (%p1862) target = $region128
        $region127: #{tpu_custom_call.1} parent=95 // pred_region
          %s1866 = ssub.s32 128, 128
          %1867 = vsyncadd %s1858, %s1866
          %s1868 = sadd.s32 %s44, %s43
          %s1869 = smul.addr %s1868, 128
          %s1870 = scalar_lea.hbm %s19, %s1869
          %s1872 = sshll.u32 %s1861, 4
          %s1873 = int_to_ptr.vmem [resolvable:$true] %s1872
          %1875 = dma.vmem_to_hbm [thread:$0]  %s1873, 128, %s1870, %s1858
        $region128: #{tpu_custom_call.1} parent=95 // pred_fallthru
          _
      $region96: #{tpu_custom_call.1} parent=5 // pred_fallthru
        _
      %p1876 = scmp.le.s32.totalorder 2, %s34
      // Predicated region
      $region129: #{tpu_custom_call.1} parent=5 // pred_check
        %p1877 = pneg %p1876
      $region130: #{tpu_custom_call.1} parent=5 // pred_check_branch
        %1879 = sbr.rel (%p1877) target = $region132
      $region131: #{tpu_custom_call.1} parent=5 // pred_region
        %s1880 = ssub.s32 %s34, 2
        // Predicated region
        $region133: #{tpu_custom_call.1} parent=131 // pred_check
          %p1881 = pneg %p493
        $region134: #{tpu_custom_call.1} parent=131 // pred_check_branch
          %1883 = sbr.rel (%p1881) target = $region136
        $region135: #{tpu_custom_call.1} parent=131 // pred_region
          %s1884 = sand.u32 %s478, 1
          %s1885 = scalar_lea.sflag [#allocation6], %s1884
          %s1886 = sand.u32 %s478, 1
          %s1887 = smul.addr %s1886, 8
          %s1888 = scalar_lea.vmem [#allocation15], %s1887
          %1889 = dma.done %s1885, 128
        $region136: #{tpu_custom_call.1} parent=131 // pred_fallthru
          _
      $region132: #{tpu_custom_call.1} parent=5 // pred_fallthru
        _
    $region6: #{tpu_custom_call.1} parent=1 // loop_footer
      %s38 = sadd.s32 1, %s34
    $region7: #{tpu_custom_call.1} parent=1 // loop_footer_branch
      %33 = sbr.rel target = $region3
    $region8: #{tpu_custom_call.1} parent=1 // loop_exit
      _
    %1890 = vsyncpa [#allocation5], 1
    %s1891 = scalar_lea.sflag [#allocation5], 1
    %1892 = vsyncpa %s1891, 1
    %1893 = vsyncpa [#allocation8], 1
    %1894 = vsyncpa [#allocation11], 1
    %1895 = vsyncpa [#allocation14], 1
    %1896 = vsyncpa [#allocation6], 1
    %s1897 = scalar_lea.sflag [#allocation6], 1
    %1898 = vsyncpa %s1897, 1

</llo_original>
